<compile_context>
chip_gen: v6e
topology: v6e:2x2x1
jax: 0.10.0
libtpu: 0.0.40
codegen_flags: <defaults>
</compile_context>

<pallas_src>
import functools

import jax
import jax.numpy as jnp
from jax import lax
from jax.experimental import pallas as pl
from jax.experimental.pallas import tpu as pltpu


def _multipath_kernel(x_ref, w_ref, b_ref, o_ref, acc_ref, *,
                      stride, tile_h, wout, ksize):
    """One (batch, output-row-stripe) tile per grid step.

    x_ref   : (1, Hp, Wp, Cin)            spatially pre-padded bf16 input (whole image)
    w_ref   : (K, K*Cin, Cout_pad)        reparameterized, kx-folded conv weight (bf16)
    b_ref   : (1, Cout_pad)               folded bias (f32)
    o_ref   : (1, tile_h*Wout, Cout_pad)  flattened lane-dense output stripe
    acc_ref : (tile_h*Wout, Cout_pad)     f32 VMEM accumulator scratch
    """
    cin = x_ref.shape[3]
    m = tile_h * wout
    row0 = pl.multiple_of(pl.program_id(1) * (tile_h * stride), tile_h * stride)

    for ky in range(ksize):
        if stride == 1:
            # One contiguous full-width ky slab; kx taps are value-level shifted
            # views of it, concatenated along the lane (channel) axis so the
            # whole (kx, Cin) extent is contracted in a single MXU pass per ky.
            slab = x_ref[0, pl.ds(row0 + ky, tile_h), :, :]          # (tile_h, Wp, Cin)
            pieces = [slab[:, kx:kx + wout, :] for kx in range(ksize)]
        else:
            # Decimation pushed into the strided ref loads instead of an
            # in-register [::stride, ::stride] select over an oversized patch.
            pieces = [x_ref[0,
                            pl.ds(row0 + ky, tile_h, stride=stride),
                            pl.ds(kx, wout, stride=stride), :]
                      for kx in range(ksize)]
        patch = jnp.concatenate(pieces, axis=-1).reshape(m, ksize * cin)
        contrib = jnp.dot(patch, w_ref[ky], preferred_element_type=jnp.float32)
        if ky == 0:
            acc_ref[...] = contrib            # init from first ky tap (no zeros pass)
        else:
            acc_ref[...] += contrib

    y = (acc_ref[...] + b_ref[...]).astype(o_ref.dtype)   # bias in f32, cast once
    o_ref[...] = y.reshape(1, m, o_ref.shape[2])


def _fold_bn(gamma, beta, mean, var, eps=1e-5):
    s = gamma / jnp.sqrt(var + eps)
    return s.astype(jnp.float32), (beta - mean * s).astype(jnp.float32)


def _round_up(x, m):
    return (x + m - 1) // m * m


def _pick_tile_h(hout, wout, cout_pad, budget_bytes=512 * 1024):
    """Largest divisor of Hout keeping the f32 accumulator under budget while
    satisfying the (8,128) constraint on the flattened output block."""
    valid = [t for t in range(1, hout + 1)
             if hout % t == 0 and (t == hout or (t * wout) % 8 == 0)]
    under = [t for t in valid if t * wout * cout_pad * 4 <= budget_bytes]
    return max(under) if under else min(valid)


def multipath_forward(x_nchw, params, *, stride, padding, tile_h=None):
    """MultiPath forward. x_nchw: (N, Cin, H, W) float32 (PyTorch layout)."""
    N, Cin, H, W = x_nchw.shape
    Cout, _, K, _ = params['w3'].shape
    has_identity = (Cin == Cout) and (stride == 1)
    # The 1x1 / identity branches only align with the KxK branch (and the
    # PyTorch elementwise add only type-checks) when padding == (K-1)//2.
    assert K % 2 == 1 and 2 * padding == K - 1, "MultiPath requires padding == (K-1)//2"

    Hout = (H + 2 * padding - K) // stride + 1
    Wout = (W + 2 * padding - K) // stride + 1

    # --- RepVGG structural reparameterization (one-time O(K^2*Cin*Cout) work) ---
    s3, b3 = _fold_bn(*params['bn3'])
    s1, b1 = _fold_bn(*params['bn1'])
    w_eq = params['w3'].astype(jnp.float32) * s3[:, None, None, None]          # OIHW
    c = K // 2
    w_eq = w_eq.at[:, :, c, c].add(
        params['w1'][:, :, 0, 0].astype(jnp.float32) * s1[:, None])
    bias = b3 + b1
    if has_identity:
        sid, bid = _fold_bn(*params['bnid'])
        w_eq = w_eq.at[:, :, c, c].add(jnp.eye(Cout, Cin, dtype=jnp.float32) * sid[:, None])
        bias = bias + bid

    # Lane-pad Cout to a multiple of 128 so output stores are full-width vst;
    # the pad is sliced off wrapper-side.
    Cout_pad = _round_up(Cout, 128)
    w_hwio = jnp.transpose(w_eq, (2, 3, 1, 0))                                 # (K,K,Cin,Cout)
    w_hwio = jnp.pad(w_hwio, ((0, 0), (0, 0), (0, 0), (0, Cout_pad - Cout)))
    # kx-folded weight: contraction axis is (kx, Cin), one dot per ky in-kernel.
    w_kfold = w_hwio.reshape(K, K * Cin, Cout_pad).astype(jnp.bfloat16)
    bias_p = jnp.pad(bias, (0, Cout_pad - Cout)).reshape(1, Cout_pad).astype(jnp.float32)

    # NCHW -> NHWC, bf16 activations, spatial pre-pad (glue outside the kernel).
    # TODO(synk): allow_input_fusion could fuse this transpose/cast/pad into the
    # Pallas input DMA (bandwidth win on v5e/v6e); kept as plain XLA glue here.
    x_nhwc = jnp.transpose(x_nchw, (0, 2, 3, 1)).astype(jnp.bfloat16)
    xpad = jnp.pad(x_nhwc, ((0, 0), (padding, padding), (padding, padding), (0, 0)))
    Hp, Wp = H + 2 * padding, W + 2 * padding

    if tile_h is None:
        tile_h = _pick_tile_h(Hout, Wout, Cout_pad)
    assert Hout % tile_h == 0 and (tile_h == Hout or (tile_h * Wout) % 8 == 0)
    n_tiles = Hout // tile_h

    # Per-generation VMEM budget derived from the actual resident buffers.
    buf_bytes = (
        2 * Hp * Wp * Cin * 2                     # input image, bf16, double-buffered
        + 2 * K * K * Cin * Cout_pad * 2          # folded weight, bf16
        + 2 * Cout_pad * 4                        # bias, f32
        + 2 * tile_h * Wout * Cout_pad * 4        # output stripe, f32
        + tile_h * Wout * Cout_pad * 4            # accumulator scratch
        + 4 * tile_h * Wout * K * Cin * 2         # patch / slab temporaries
    )
    try:
        phys_vmem = int(getattr(pltpu.get_tpu_info(), 'vmem_capacity_bytes',
                                64 * 1024 * 1024))
    except Exception:
        phys_vmem = 64 * 1024 * 1024
    vmem_limit = int(min(max(2 * buf_bytes, 16 * 1024 * 1024), (3 * phys_vmem) // 4))

    kernel = functools.partial(_multipath_kernel, stride=stride,
                               tile_h=tile_h, wout=Wout, ksize=K)

    out_flat = pl.pallas_call(
        kernel,
        out_shape=jax.ShapeDtypeStruct((N, Hout * Wout, Cout_pad), x_nchw.dtype),
        grid_spec=pltpu.PrefetchScalarGridSpec(
            num_scalar_prefetch=0,
            grid=(N, n_tiles),
            in_specs=[
                # Whole padded image per batch element: block index is constant
                # across the stripe axis, so the image is DMA'd once per batch.
                # TODO(synk): halo-stripe the input for very large feature maps.
                pl.BlockSpec((1, Hp, Wp, Cin), lambda n, ph: (n, 0, 0, 0)),
                pl.BlockSpec((K, K * Cin, Cout_pad), lambda n, ph: (0, 0, 0)),
                pl.BlockSpec((1, Cout_pad), lambda n, ph: (0, 0)),
            ],
            out_specs=pl.BlockSpec((1, tile_h * Wout, Cout_pad),
                                   lambda n, ph: (n, ph, 0)),
            scratch_shapes=[pltpu.VMEM((tile_h * Wout, Cout_pad), jnp.float32)],
        ),
        compiler_params=pltpu.CompilerParams(
            dimension_semantics=("parallel", "parallel"),
            vmem_limit_bytes=vmem_limit),
    )(xpad, w_kfold, bias_p)

    out_nhwc = out_flat.reshape(N, Hout, Wout, Cout_pad)[..., :Cout]
    return jnp.transpose(out_nhwc, (0, 3, 1, 2))  # back to NCHW


def multipath_reference(x, params, *, stride, padding):
    """Pure-JAX reference mirroring the PyTorch module (inference-mode BN)."""
    dn = ('NCHW', 'OIHW', 'NCHW')
    Cin = x.shape[1]
    Cout = params['w3'].shape[0]
    has_identity = (Cin == Cout) and (stride == 1)

    def bn(y, gamma, beta, mean, var, eps=1e-5):
        s = gamma / jnp.sqrt(var + eps)
        return y * s[None, :, None, None] + (beta - mean * s)[None, :, None, None]

    y3 = lax.conv_general_dilated(x, params['w3'], (stride, stride),
                                  [(padding, padding)] * 2, dimension_numbers=dn)
    y3 = bn(y3, *params['bn3'])
    y1 = lax.conv_general_dilated(x, params['w1'], (stride, stride),
                                  [(0, 0)] * 2, dimension_numbers=dn)
    y1 = bn(y1, *params['bn1'])
    out = y3 + y1
    if has_identity:
        out = out + bn(x, *params['bnid'])
    return out


def _make_params(key, inplanes, outplanes, kernel_size):
    ks = jax.random.split(key, 14)

    def bn_params(k0, k1, k2, k3, c):
        gamma = jax.random.uniform(k0, (c,), jnp.float32, 0.5, 1.5)
        beta = 0.1 * jax.random.normal(k1, (c,), jnp.float32)
        mean = 0.1 * jax.random.normal(k2, (c,), jnp.float32)
        var = jax.random.uniform(k3, (c,), jnp.float32, 0.5, 1.5)
        return (gamma, beta, mean, var)

    return {
        'w3': 0.1 * jax.random.normal(ks[0], (outplanes, inplanes, kernel_size, kernel_size), jnp.float32),
        'w1': 0.1 * jax.random.normal(ks[1], (outplanes, inplanes, 1, 1), jnp.float32),
        'bn3': bn_params(ks[2], ks[3], ks[4], ks[5], outplanes),
        'bn1': bn_params(ks[6], ks[7], ks[8], ks[9], outplanes),
        'bnid': bn_params(ks[10], ks[11], ks[12], ks[13], inplanes),
    }


if __name__ == "__main__":
    key = jax.random.PRNGKey(0)
    kx_, kp_, kp2_ = jax.random.split(key, 3)

    # Config consistent with MultiPath(inplanes=4, outplanes=4, kernel_size=3,
    # stride=1, padding=1, groups=1) -> identity BN branch present.
    N, C, H, W = 2, 4, 16, 16
    kernel_size, stride, padding = 3, 1, 1
    x = jax.random.normal(kx_, (N, C, H, W), jnp.float32)  # NCHW, as in PyTorch
    params = _make_params(kp_, C, C, kernel_size)
    ref = multipath_reference(x, params, stride=stride, padding=padding)

    # A) Force a 2-stripe spatial grid so the row-tiling path is exercised.
    out = jax.block_until_ready(
        multipath_forward(x, params, stride=stride, padding=padding, tile_h=8))
    assert out.shape == ref.shape == (N, C, H, W)
    assert jnp.all(jnp.isfinite(out))
    assert jnp.allclose(out, ref, atol=2e-2, rtol=2e-2), (
        f"max abs err = {float(jnp.max(jnp.abs(out - ref)))}")

    # B) Auto tile selection (single stripe at this tiny size).
    out_auto = jax.block_until_ready(
        multipath_forward(x, params, stride=stride, padding=padding))
    assert jnp.allclose(out_auto, ref, atol=2e-2, rtol=2e-2), (
        f"max abs err (auto tile) = {float(jnp.max(jnp.abs(out_auto - ref)))}")

    # C) Cin != Cout -> no identity branch; exercises the no-identity fold and
    #    the Cout lane-padding path with a different output width.
    params2 = _make_params(kp2_, C, 8, kernel_size)
    ref2 = multipath_reference(x, params2, stride=stride, padding=padding)
    out2 = jax.block_until_ready(
        multipath_forward(x, params2, stride=stride, padding=padding))
    assert out2.shape == ref2.shape == (N, 8, H, W)
    assert jnp.allclose(out2, ref2, atol=2e-2, rtol=2e-2), (
        f"max abs err (no-identity) = {float(jnp.max(jnp.abs(out2 - ref2)))}")

    print("KERNEL_OK")
</pallas_src>

<mosaic_0001>
module attributes {stable_mosaic.version = 11 : i64} {
  func.func @_multipath_kernel(%arg0: i32, %arg1: i32, %arg2: memref<1x18x18x4xbf16, #tpu.memory_space<vmem>>, %arg3: memref<3x12x128xbf16, #tpu.memory_space<vmem>>, %arg4: memref<1x128xf32, #tpu.memory_space<vmem>>, %arg5: memref<1x128x128xf32, #tpu.memory_space<vmem>>, %arg6: memref<128x128xf32, #tpu.memory_space<vmem>>) attributes {dimension_semantics = [#tpu.dimension_semantics<parallel>, #tpu.dimension_semantics<parallel>], iteration_bounds = array<i64: 2, 2>, scalar_prefetch = 0 : i64, scratch_operands = 1 : i64, tpu.core_type = #tpu.core_type<tc>, window_params = [{transform_indices = @transform_0, window_bounds = array<i64: 1, 18, 18, 4>}, {pipeline_mode = #tpu.pipeline_mode<synchronous>, transform_indices = @transform_1, window_bounds = array<i64: 3, 12, 128>}, {pipeline_mode = #tpu.pipeline_mode<synchronous>, transform_indices = @transform_2, window_bounds = array<i64: 1, 128>}, {transform_indices = @transform_3, window_bounds = array<i64: 1, 128, 128>}]} {
    %c8_i32 = arith.constant 8 : i32
    %0 = arith.muli %arg1, %c8_i32 : i32
    %1 = tpu.assume_multiple %0, 8 : i32
    %c0_i32 = arith.constant 0 : i32
    %2 = arith.addi %1, %c0_i32 : i32
    %c0 = arith.constant 0 : index
    %3 = arith.index_cast %2 : i32 to index
    %c0_0 = arith.constant 0 : index
    %c0_1 = arith.constant 0 : index
    %4 = vector.load %arg2[%c0, %3, %c0_0, %c0_1] : memref<1x18x18x4xbf16, #tpu.memory_space<vmem>>, vector<1x8x18x4xbf16>
    %5 = vector.shape_cast %4 : vector<1x8x18x4xbf16> to vector<8x18x4xbf16>
    %6 = vector.extract_strided_slice %5 {offsets = [0, 0, 0], sizes = [8, 16, 4], strides = [1, 1, 1]} : vector<8x18x4xbf16> to vector<8x16x4xbf16>
    %7 = vector.extract_strided_slice %5 {offsets = [0, 1, 0], sizes = [8, 16, 4], strides = [1, 1, 1]} : vector<8x18x4xbf16> to vector<8x16x4xbf16>
    %8 = vector.extract_strided_slice %5 {offsets = [0, 2, 0], sizes = [8, 16, 4], strides = [1, 1, 1]} : vector<8x18x4xbf16> to vector<8x16x4xbf16>
    %9 = tpu.concatenate %6, %7, %8 in 2 : vector<8x16x4xbf16>, vector<8x16x4xbf16>, vector<8x16x4xbf16> -> vector<8x16x12xbf16>
    %10 = vector.shape_cast %9 : vector<8x16x12xbf16> to vector<128x12xbf16>
    %c0_2 = arith.constant 0 : index
    %c0_3 = arith.constant 0 : index
    %c0_4 = arith.constant 0 : index
    %11 = vector.load %arg3[%c0_2, %c0_3, %c0_4] : memref<3x12x128xbf16, #tpu.memory_space<vmem>>, vector<1x12x128xbf16>
    %12 = vector.shape_cast %11 : vector<1x12x128xbf16> to vector<12x128xbf16>
    %cst = arith.constant dense<0.000000e+00> : vector<128x128xf32>
    %13 = tpu.matmul %10, %12, %cst {dimension_numbers = #tpu.dot_dimension_numbers<[1], [0], [0], [1], [0, 0, 1, 1], [], []>} : vector<128x12xbf16>, vector<12x128xbf16>, vector<128x128xf32> -> vector<128x128xf32>
    %c0_5 = arith.constant 0 : index
    %c0_6 = arith.constant 0 : index
    %14 = vector.load %arg6[%c0_5, %c0_6] : memref<128x128xf32, #tpu.memory_space<vmem>>, vector<128x128xf32>
    tpu.vector_store %arg6[%c0_5, %c0_6], %13 {strides = array<i32>} : memref<128x128xf32, #tpu.memory_space<vmem>>, vector<128x128xf32>,
    %c1_i32 = arith.constant 1 : i32
    %15 = arith.addi %1, %c1_i32 : i32
    %c0_7 = arith.constant 0 : index
    %16 = arith.index_cast %15 : i32 to index
    %c0_8 = arith.constant 0 : index
    %c0_9 = arith.constant 0 : index
    %17 = vector.load %arg2[%c0_7, %16, %c0_8, %c0_9] : memref<1x18x18x4xbf16, #tpu.memory_space<vmem>>, vector<1x8x18x4xbf16>
    %18 = vector.shape_cast %17 : vector<1x8x18x4xbf16> to vector<8x18x4xbf16>
    %19 = vector.extract_strided_slice %18 {offsets = [0, 0, 0], sizes = [8, 16, 4], strides = [1, 1, 1]} : vector<8x18x4xbf16> to vector<8x16x4xbf16>
    %20 = vector.extract_strided_slice %18 {offsets = [0, 1, 0], sizes = [8, 16, 4], strides = [1, 1, 1]} : vector<8x18x4xbf16> to vector<8x16x4xbf16>
    %21 = vector.extract_strided_slice %18 {offsets = [0, 2, 0], sizes = [8, 16, 4], strides = [1, 1, 1]} : vector<8x18x4xbf16> to vector<8x16x4xbf16>
    %22 = tpu.concatenate %19, %20, %21 in 2 : vector<8x16x4xbf16>, vector<8x16x4xbf16>, vector<8x16x4xbf16> -> vector<8x16x12xbf16>
    %23 = vector.shape_cast %22 : vector<8x16x12xbf16> to vector<128x12xbf16>
    %c1 = arith.constant 1 : index
    %c0_10 = arith.constant 0 : index
    %c0_11 = arith.constant 0 : index
    %24 = vector.load %arg3[%c1, %c0_10, %c0_11] : memref<3x12x128xbf16, #tpu.memory_space<vmem>>, vector<1x12x128xbf16>
    %25 = vector.shape_cast %24 : vector<1x12x128xbf16> to vector<12x128xbf16>
    %cst_12 = arith.constant dense<0.000000e+00> : vector<128x128xf32>
    %26 = tpu.matmul %23, %25, %cst_12 {dimension_numbers = #tpu.dot_dimension_numbers<[1], [0], [0], [1], [0, 0, 1, 1], [], []>} : vector<128x12xbf16>, vector<12x128xbf16>, vector<128x128xf32> -> vector<128x128xf32>
    %c0_13 = arith.constant 0 : index
    %c0_14 = arith.constant 0 : index
    %27 = vector.load %arg6[%c0_13, %c0_14] : memref<128x128xf32, #tpu.memory_space<vmem>>, vector<128x128xf32>
    %28 = arith.addf %27, %26 : vector<128x128xf32>
    %c0_15 = arith.constant 0 : index
    %c0_16 = arith.constant 0 : index
    %29 = vector.load %arg6[%c0_15, %c0_16] : memref<128x128xf32, #tpu.memory_space<vmem>>, vector<128x128xf32>
    tpu.vector_store %arg6[%c0_15, %c0_16], %28 {strides = array<i32>} : memref<128x128xf32, #tpu.memory_space<vmem>>, vector<128x128xf32>,
    %c2_i32 = arith.constant 2 : i32
    %30 = arith.addi %1, %c2_i32 : i32
    %c0_17 = arith.constant 0 : index
    %31 = arith.index_cast %30 : i32 to index
    %c0_18 = arith.constant 0 : index
    %c0_19 = arith.constant 0 : index
    %32 = vector.load %arg2[%c0_17, %31, %c0_18, %c0_19] : memref<1x18x18x4xbf16, #tpu.memory_space<vmem>>, vector<1x8x18x4xbf16>
    %33 = vector.shape_cast %32 : vector<1x8x18x4xbf16> to vector<8x18x4xbf16>
    %34 = vector.extract_strided_slice %33 {offsets = [0, 0, 0], sizes = [8, 16, 4], strides = [1, 1, 1]} : vector<8x18x4xbf16> to vector<8x16x4xbf16>
    %35 = vector.extract_strided_slice %33 {offsets = [0, 1, 0], sizes = [8, 16, 4], strides = [1, 1, 1]} : vector<8x18x4xbf16> to vector<8x16x4xbf16>
    %36 = vector.extract_strided_slice %33 {offsets = [0, 2, 0], sizes = [8, 16, 4], strides = [1, 1, 1]} : vector<8x18x4xbf16> to vector<8x16x4xbf16>
    %37 = tpu.concatenate %34, %35, %36 in 2 : vector<8x16x4xbf16>, vector<8x16x4xbf16>, vector<8x16x4xbf16> -> vector<8x16x12xbf16>
    %38 = vector.shape_cast %37 : vector<8x16x12xbf16> to vector<128x12xbf16>
    %c2 = arith.constant 2 : index
    %c0_20 = arith.constant 0 : index
    %c0_21 = arith.constant 0 : index
    %39 = vector.load %arg3[%c2, %c0_20, %c0_21] : memref<3x12x128xbf16, #tpu.memory_space<vmem>>, vector<1x12x128xbf16>
    %40 = vector.shape_cast %39 : vector<1x12x128xbf16> to vector<12x128xbf16>
    %cst_22 = arith.constant dense<0.000000e+00> : vector<128x128xf32>
    %41 = tpu.matmul %38, %40, %cst_22 {dimension_numbers = #tpu.dot_dimension_numbers<[1], [0], [0], [1], [0, 0, 1, 1], [], []>} : vector<128x12xbf16>, vector<12x128xbf16>, vector<128x128xf32> -> vector<128x128xf32>
    %c0_23 = arith.constant 0 : index
    %c0_24 = arith.constant 0 : index
    %42 = vector.load %arg6[%c0_23, %c0_24] : memref<128x128xf32, #tpu.memory_space<vmem>>, vector<128x128xf32>
    %43 = arith.addf %42, %41 : vector<128x128xf32>
    %c0_25 = arith.constant 0 : index
    %c0_26 = arith.constant 0 : index
    %44 = vector.load %arg6[%c0_25, %c0_26] : memref<128x128xf32, #tpu.memory_space<vmem>>, vector<128x128xf32>
    tpu.vector_store %arg6[%c0_25, %c0_26], %43 {strides = array<i32>} : memref<128x128xf32, #tpu.memory_space<vmem>>, vector<128x128xf32>,
    %c0_27 = arith.constant 0 : index
    %c0_28 = arith.constant 0 : index
    %45 = vector.load %arg6[%c0_27, %c0_28] : memref<128x128xf32, #tpu.memory_space<vmem>>, vector<128x128xf32>
    %c0_29 = arith.constant 0 : index
    %c0_30 = arith.constant 0 : index
    %46 = vector.load %arg4[%c0_29, %c0_30] : memref<1x128xf32, #tpu.memory_space<vmem>>, vector<1x128xf32>
    %47 = vector.broadcast %46 : vector<1x128xf32> to vector<128x128xf32>
    %48 = arith.addf %45, %47 : vector<128x128xf32>
    %49 = vector.shape_cast %48 : vector<128x128xf32> to vector<1x128x128xf32>
    %c0_31 = arith.constant 0 : index
    %c0_32 = arith.constant 0 : index
    %c0_33 = arith.constant 0 : index
    %50 = vector.load %arg5[%c0_31, %c0_32, %c0_33] : memref<1x128x128xf32, #tpu.memory_space<vmem>>, vector<1x128x128xf32>
    tpu.vector_store %arg5[%c0_31, %c0_32, %c0_33], %49 {strides = array<i32>} : memref<1x128x128xf32, #tpu.memory_space<vmem>>, vector<1x128x128xf32>,
    return
  }
  func.func @transform_0(%arg0: i32, %arg1: i32) -> (i32, i32, i32, i32) {
    %c0_i32 = arith.constant 0 : i32
    %c0_i32_0 = arith.constant 0 : i32
    %c0_i32_1 = arith.constant 0 : i32
    %c0_i32_2 = arith.constant 0 : i32
    return %arg0, %c0_i32, %c0_i32_0, %c0_i32_1 : i32, i32, i32, i32
  }
  func.func @transform_1(%arg0: i32, %arg1: i32) -> (i32, i32, i32) {
    %c0_i32 = arith.constant 0 : i32
    %c0_i32_0 = arith.constant 0 : i32
    %c0_i32_1 = arith.constant 0 : i32
    %c0_i32_2 = arith.constant 0 : i32
    return %c0_i32, %c0_i32_0, %c0_i32_1 : i32, i32, i32
  }
  func.func @transform_2(%arg0: i32, %arg1: i32) -> (i32, i32) {
    %c0_i32 = arith.constant 0 : i32
    %c0_i32_0 = arith.constant 0 : i32
    %c0_i32_1 = arith.constant 0 : i32
    return %c0_i32, %c0_i32_0 : i32, i32
  }
  func.func @transform_3(%arg0: i32, %arg1: i32) -> (i32, i32, i32) {
    %c0_i32 = arith.constant 0 : i32
    %c0_i32_0 = arith.constant 0 : i32
    return %arg0, %arg1, %c0_i32 : i32, i32, i32
  }
}

</mosaic_0001>

<llo_original>
// kernel: tpu_custom_call.1
$region0: #{tpu_custom_call.1}
  #allocation0 [shape = 'u32[]', space=smem, size = 0x4, offset = 0x4, fixed_abs, tag = 'smem constant byte address 0x4 - core index']
  #allocation1 [shape = 'u32[144,128]{1,0:T(1,128)}', space=vmem, size = 0x12000, scoped, tag = 'internal scratch']
  #allocation2 [shape = 'f32[128,128]{1,0:T(8,128)}', space=vmem, size = 0x10000, scoped, tag = 'scratch operand']
  %s0 = inlined_call_operand.vmem [shape: bf16[2,18,18,4], index: 0, kind: input, shape index: {}]
  %s1 = inlined_call_operand.vmem [shape: bf16[3,12,128], index: 1, kind: input, shape index: {}]
  %s2 = inlined_call_operand.vmem [shape: f32[1,128], index: 2, kind: input, shape index: {}]
  %s3 = inlined_call_operand.hbm [shape: f32[2,256,128], index: 3, kind: output, shape index: {}]
  %s4 = sld [smem:[#allocation0]]
  $region45: #{tpu_custom_call.1} parent=0
    _
  %s6 = ssub.s32 1, %s4
  %s7 = scalar_select 0, %s6, %s4
  $region1: #{tpu_custom_call.1} parent=0
    #allocation3 [shape = 'u8[131072]{0}', space=vmem, size = 0x20000, scoped, tag = 'output window, operand 0']
    #allocation4 [shape = 's32[2]{0}', space=sflag, size = 0x8, scoped, tag = 'scoped memory for tpu_custom_call.1']
    %8 = vsyncpa [#allocation4], 0
    %s9 = scalar_lea.sflag [#allocation4], 1
    %10 = vsyncpa %s9, 0
    loop: start=0, step=1, limit=6
    $region2: #{tpu_custom_call.1} parent=1 // loop_pre_header
      _
    $region3: #{tpu_custom_call.1} parent=1 // loop_header
      %s12 = sphi 0, %s16
      %p13 = scmp.ge.s32.totalorder %s12, 6
      %s19 = sphi 0, %s31
      %s20 = sphi 0, %s27
      %s21 = sphi 0, %s19
      %s22 = sphi 0, %s20
      %s23 = sphi 0, %s21
      %s24 = sphi 0, %s22
      %s34 = sphi 0, %s36
      %s37 = sphi 0, %s34
      %s38 = sphi 0, %s37
      %s54 = sphi 0, %s38
      %s58 = sphi 0, %s58
      %s60 = sphi 0, %s58
      %s61 = sphi 0, %s60
      %s75 = sphi 0, %s61
      %s79 = sphi 0, %s79
      %s81 = sphi 0, %s79
      %s82 = sphi 0, %s81
      %s96 = sphi 0, %s82
      %s104 = sphi 0, %s106
      %s107 = sphi 0, %s104
      %s108 = sphi 0, %s107
      %s124 = sphi 0, %s108
    $region4: #{tpu_custom_call.1} parent=1 // loop_header_branch
      %15 = sbr.rel (%p13) target = $region8
    $region5: #{tpu_custom_call.1} parent=1 // loop_body
      %s17 = ssub.s32 %s12, 1
      %s18 = ssub.s32 %s12, 2
      %s25 = sadd.s32 1, %s20
      %p26 = scmp.ge.s32.totalorder %s25, 2
      %s27 = scalar_select %p26, 0, %s25
      %s28 = sadd.s32 1, %s19
      %s29 = scalar_select %p26, %s28, %s19
      %p30 = scmp.ge.s32.totalorder %s29, 2
      %s31 = scalar_select %p30, 0, %s29
      %s32 = ssub.s32 %s19, %s31
      %p33 = scmp.eq.s32.totalorder %s32, 0
      %s35 = sadd.s32 %s34, 1
      %s36 = scalar_select %p33, %s34, %s35
      %p39 = pneg %p33
      %p40 = scmp.eq.s32.totalorder %s12, 3
      %p41 = por %p39, %p40
      %p42 = scmp.ne.s32.totalorder %s34, %s37
      %p43 = scmp.eq.s32.totalorder %s12, 0
      %p44 = por %p42, %p43
      %p45 = scmp.ne.s32.totalorder %s34, %s37
      %p46 = scmp.eq.s32.totalorder %s17, 3
      %p47 = por %p45, %p46
      %p48 = scmp.ne.s32.totalorder %s37, %s38
      %p49 = scmp.eq.s32.totalorder %s17, 0
      %p50 = por %p48, %p49
      %p51 = scmp.ne.s32.totalorder %s37, %s38
      %p52 = scmp.eq.s32.totalorder %s18, 3
      %p53 = por %p51, %p52
      %p55 = scmp.ne.s32.totalorder %s38, %s54
      %p56 = scmp.eq.s32.totalorder %s18, 0
      %p57 = por %p55, %p56
      %s59 = sadd.s32 %s58, 1
      %p62 = scmp.eq.s32.totalorder %s12, 3
      %p63 = scmp.ne.s32.totalorder %s58, %s60
      %p64 = scmp.eq.s32.totalorder %s12, 0
      %p65 = por %p63, %p64
      %p66 = scmp.ne.s32.totalorder %s58, %s60
      %p67 = scmp.eq.s32.totalorder %s17, 3
      %p68 = por %p66, %p67
      %p69 = scmp.ne.s32.totalorder %s60, %s61
      %p70 = scmp.eq.s32.totalorder %s17, 0
      %p71 = por %p69, %p70
      %p72 = scmp.ne.s32.totalorder %s60, %s61
      %p73 = scmp.eq.s32.totalorder %s18, 3
      %p74 = por %p72, %p73
      %p76 = scmp.ne.s32.totalorder %s61, %s75
      %p77 = scmp.eq.s32.totalorder %s18, 0
      %p78 = por %p76, %p77
      %s80 = sadd.s32 %s79, 1
      %p83 = scmp.eq.s32.totalorder %s12, 3
      %p84 = scmp.ne.s32.totalorder %s79, %s81
      %p85 = scmp.eq.s32.totalorder %s12, 0
      %p86 = por %p84, %p85
      %p87 = scmp.ne.s32.totalorder %s79, %s81
      %p88 = scmp.eq.s32.totalorder %s17, 3
      %p89 = por %p87, %p88
      %p90 = scmp.ne.s32.totalorder %s81, %s82
      %p91 = scmp.eq.s32.totalorder %s17, 0
      %p92 = por %p90, %p91
      %p93 = scmp.ne.s32.totalorder %s81, %s82
      %p94 = scmp.eq.s32.totalorder %s18, 3
      %p95 = por %p93, %p94
      %p97 = scmp.ne.s32.totalorder %s82, %s96
      %p98 = scmp.eq.s32.totalorder %s18, 0
      %p99 = por %p97, %p98
      %s100 = ssub.s32 %s19, %s31
      %s101 = ssub.s32 %s20, %s27
      %s102 = sor.u32 %s100, %s101
      %p103 = scmp.eq.s32.totalorder %s102, 0
      %s105 = sadd.s32 %s104, 1
      %s106 = scalar_select %p103, %s104, %s105
      %p109 = pneg %p103
      %p110 = scmp.eq.s32.totalorder %s12, 3
      %p111 = por %p109, %p110
      %p112 = scmp.ne.s32.totalorder %s104, %s107
      %p113 = scmp.eq.s32.totalorder %s12, 0
      %p114 = por %p112, %p113
      %p115 = scmp.ne.s32.totalorder %s104, %s107
      %p116 = scmp.eq.s32.totalorder %s17, 3
      %p117 = por %p115, %p116
      %p118 = scmp.ne.s32.totalorder %s107, %s108
      %p119 = scmp.eq.s32.totalorder %s17, 0
      %p120 = por %p118, %p119
      %p121 = scmp.ne.s32.totalorder %s107, %s108
      %p122 = scmp.eq.s32.totalorder %s18, 3
      %p123 = por %p121, %p122
      %p125 = scmp.ne.s32.totalorder %s108, %s124
      %p126 = scmp.eq.s32.totalorder %s18, 0
      %p127 = por %p125, %p126
      %p128 = scmp.le.s32.totalorder 1, %s12
      %p129 = scmp.lt.s32.totalorder %s12, 5
      %p130 = pnand %p128, %p129
      %p131 = pneg %p130
      // Predicated region
      $region9: #{tpu_custom_call.1} parent=5 // pred_check
        _
      $region10: #{tpu_custom_call.1} parent=5 // pred_check_branch
        %133 = sbr.rel (%p130) target = $region12
      $region11: #{tpu_custom_call.1} parent=5 // pred_region
        %s134 = ssub.s32 %s12, 1
        // Predicated region
        $region13: #{tpu_custom_call.1} parent=11 // pred_check
          %p135 = pneg %p71
        $region14: #{tpu_custom_call.1} parent=11 // pred_check_branch
          %137 = sbr.rel (%p135) target = $region16
        $region15: #{tpu_custom_call.1} parent=11 // pred_region
          _
        $region16: #{tpu_custom_call.1} parent=11 // pred_fallthru
          _
        // Predicated region
        $region17: #{tpu_custom_call.1} parent=11 // pred_check
          %p138 = pneg %p92
        $region18: #{tpu_custom_call.1} parent=11 // pred_check_branch
          %140 = sbr.rel (%p138) target = $region20
        $region19: #{tpu_custom_call.1} parent=11 // pred_region
          _
        $region20: #{tpu_custom_call.1} parent=11 // pred_fallthru
          _
      $region12: #{tpu_custom_call.1} parent=5 // pred_fallthru
        _
      %p141 = scmp.lt.s32.totalorder %s12, 4
      // Predicated region
      $region21: #{tpu_custom_call.1} parent=5 // pred_check
        %p142 = pneg %p141
      $region22: #{tpu_custom_call.1} parent=5 // pred_check_branch
        %144 = sbr.rel (%p142) target = $region24
      $region23: #{tpu_custom_call.1} parent=5 // pred_region
        // Predicated region
        $region25: #{tpu_custom_call.1} parent=23 // pred_check
          %p145 = pneg %p44
        $region26: #{tpu_custom_call.1} parent=23 // pred_check_branch
          %147 = sbr.rel (%p145) target = $region28
        $region27: #{tpu_custom_call.1} parent=23 // pred_region
          %p148 = scmp.lt.s32.totalorder %s19, 1
          %s149 = scalar_select %p148, %s19, 1
          %s150 = smul.addr %s149, 54
          %s151 = smul.addr %s150, 4
          %s152 = scalar_lea.vmem %s0, %s151
        $region28: #{tpu_custom_call.1} parent=23 // pred_fallthru
          _
      $region24: #{tpu_custom_call.1} parent=5 // pred_fallthru
        _
      %p153 = scmp.le.s32.totalorder 1, %s12
      %p154 = scmp.lt.s32.totalorder %s12, 5
      %p155 = pnand %p153, %p154
      %p156 = pneg %p155
      // Predicated region
      $region29: #{tpu_custom_call.1} parent=5 // pred_check
        _
      $region30: #{tpu_custom_call.1} parent=5 // pred_check_branch
        %158 = sbr.rel (%p155) target = $region32
      $region31: #{tpu_custom_call.1} parent=5 // pred_region
        %s159 = ssub.s32 %s12, 1
        %p160 = scmp.lt.s32.totalorder %s21, 1
        %s161 = scalar_select %p160, %s21, 1
        %s162 = smul.addr %s161, 54
        %s163 = smul.addr %s162, 4
        %s164 = scalar_lea.vmem %s0, %s163
        %p165 = pneg %p50
        %p166 = pneg %p47
        %p167 = pneg %p71
        %p168 = pneg %p68
        %p169 = pneg %p92
        %p170 = pneg %p89
        %p171 = pneg %p120
        %p172 = pneg %p117
        %s173 = sand.u32 %s107, 1
        %s174 = scalar_lea.sflag [#allocation4], %s173
        %s175 = sand.u32 %s107, 1
        %s176 = smul.addr %s175, 128
        %s177 = scalar_lea.vmem [#allocation3], %s176
        %p178 = scmp.lt.s32.totalorder %s21, 1
        %s179 = scalar_select %p178, %s21, 1
        %s180 = smul.addr %s179, 54
        %s181 = smul.addr %s180, 4
        %s182 = scalar_lea.vmem %s0, %s181
        %s183 = smul.u32 16, %s22
        %s185 = smul.u32 %s22, 8
        %s186 = smul.u32 %s185, 3
        %s187 = smul.addr %s186, 4
        %s188 = scalar_lea.vmem %s182, %s187
        %v189 = vld [vmem:[%s188] sm:$0xf]
        %v190 = vld [vmem:[%s188 + $0x4] sm:$0xf]
        %v191 = vld [vmem:[%s188 + $0x8] sm:$0x1]
        %v192 = vld [vmem:[%s188 + $0xc] sm:$0xf]
        %v193 = vld [vmem:[%s188 + $0x10] sm:$0xf]
        %v194 = vld [vmem:[%s188 + $0x14] sm:$0x1]
        %v195 = vld [vmem:[%s188 + $0x18] sm:$0xf]
        %v196 = vld [vmem:[%s188 + $0x1c] sm:$0xf]
        %v197 = vld [vmem:[%s188 + $0x20] sm:$0x1]
        %v198 = vld [vmem:[%s188 + $0x24] sm:$0xf]
        %v199 = vld [vmem:[%s188 + $0x28] sm:$0xf]
        %v200 = vld [vmem:[%s188 + $0x2c] sm:$0x1]
        %v201 = vld [vmem:[%s188 + $0x30] sm:$0xf]
        %v202 = vld [vmem:[%s188 + $0x34] sm:$0xf]
        %v203 = vld [vmem:[%s188 + $0x38] sm:$0x1]
        %v204 = vld [vmem:[%s188 + $0x3c] sm:$0xf]
        %v205 = vld [vmem:[%s188 + $0x40] sm:$0xf]
        %v206 = vld [vmem:[%s188 + $0x44] sm:$0x1]
        %v207 = vld [vmem:[%s188 + $0x48] sm:$0xf]
        %v208 = vld [vmem:[%s188 + $0x4c] sm:$0xf]
        %v209 = vld [vmem:[%s188 + $0x50] sm:$0x1]
        %v210 = vld [vmem:[%s188 + $0x54] sm:$0xf]
        %v211 = vld [vmem:[%s188 + $0x58] sm:$0xf]
        %v212 = vld [vmem:[%s188 + $0x5c] sm:$0x1]
        %v229 = vunpack.c.l.b16 %v189
        %v230 = vunpack.c.l.b16 %v190
        %v231 = vunpack.c.l.b16 %v192
        %v232 = vunpack.c.l.b16 %v193
        %v233 = vunpack.c.l.b16 %v195
        %v234 = vunpack.c.l.b16 %v196
        %v235 = vunpack.c.l.b16 %v198
        %v236 = vunpack.c.l.b16 %v199
        %v237 = vunpack.c.l.b16 %v201
        %v238 = vunpack.c.l.b16 %v202
        %v239 = vunpack.c.l.b16 %v204
        %v240 = vunpack.c.l.b16 %v205
        %v241 = vunpack.c.l.b16 %v207
        %v242 = vunpack.c.l.b16 %v208
        %v243 = vunpack.c.l.b16 %v210
        %v244 = vunpack.c.l.b16 %v211
        %v245 = vpack.c.b16 %v230, %v229
        %v246 = vpack.c.b16 %v232, %v231
        %v247 = vpack.c.b16 %v234, %v233
        %v248 = vpack.c.b16 %v236, %v235
        %v249 = vpack.c.b16 %v238, %v237
        %v250 = vpack.c.b16 %v240, %v239
        %v251 = vpack.c.b16 %v242, %v241
        %v252 = vpack.c.b16 %v244, %v243
        %v261 = vunpack.c.l.b16 %v191
        %v262 = vunpack.c.l.b16 %v194
        %v263 = vunpack.c.l.b16 %v197
        %v264 = vunpack.c.l.b16 %v200
        %v265 = vunpack.c.l.b16 %v203
        %v266 = vunpack.c.l.b16 %v206
        %v267 = vunpack.c.l.b16 %v209
        %v268 = vunpack.c.l.b16 %v212
        %v269 = vpack.c.b16 %v261, %v261
        %v270 = vpack.c.b16 %v262, %v262
        %v271 = vpack.c.b16 %v263, %v263
        %v272 = vpack.c.b16 %v264, %v264
        %v273 = vpack.c.b16 %v265, %v265
        %v274 = vpack.c.b16 %v266, %v266
        %v275 = vpack.c.b16 %v267, %v267
        %v276 = vpack.c.b16 %v268, %v268
        %vm277 = vsmask.f32 7424
        %v279 = vshrl.u32 %v245, 16
        %v281 = vshll.u32 %v245, 16
        %v283 = vrot.slane %v281, 1
        %v284 = vor.u32 %v279, %v283
        %v286 = vshll.u32 %v269, 16
        %v288 = vrot.slane %v286, 1
        %v289 = vsel %vm277, %v284, %v288
        %v291 = vshrl.u32 %v246, 16
        %v293 = vshll.u32 %v246, 16
        %v295 = vrot.slane %v293, 1
        %v296 = vor.u32 %v291, %v295
        %v298 = vshll.u32 %v270, 16
        %v300 = vrot.slane %v298, 1
        %v301 = vsel %vm277, %v296, %v300
        %v303 = vshrl.u32 %v247, 16
        %v305 = vshll.u32 %v247, 16
        %v307 = vrot.slane %v305, 1
        %v308 = vor.u32 %v303, %v307
        %v310 = vshll.u32 %v271, 16
        %v312 = vrot.slane %v310, 1
        %v313 = vsel %vm277, %v308, %v312
        %v315 = vshrl.u32 %v248, 16
        %v317 = vshll.u32 %v248, 16
        %v319 = vrot.slane %v317, 1
        %v320 = vor.u32 %v315, %v319
        %v322 = vshll.u32 %v272, 16
        %v324 = vrot.slane %v322, 1
        %v325 = vsel %vm277, %v320, %v324
        %v327 = vshrl.u32 %v249, 16
        %v329 = vshll.u32 %v249, 16
        %v331 = vrot.slane %v329, 1
        %v332 = vor.u32 %v327, %v331
        %v334 = vshll.u32 %v273, 16
        %v336 = vrot.slane %v334, 1
        %v337 = vsel %vm277, %v332, %v336
        %v339 = vshrl.u32 %v250, 16
        %v341 = vshll.u32 %v250, 16
        %v343 = vrot.slane %v341, 1
        %v344 = vor.u32 %v339, %v343
        %v346 = vshll.u32 %v274, 16
        %v348 = vrot.slane %v346, 1
        %v349 = vsel %vm277, %v344, %v348
        %v351 = vshrl.u32 %v251, 16
        %v353 = vshll.u32 %v251, 16
        %v355 = vrot.slane %v353, 1
        %v356 = vor.u32 %v351, %v355
        %v358 = vshll.u32 %v275, 16
        %v360 = vrot.slane %v358, 1
        %v361 = vsel %vm277, %v356, %v360
        %v363 = vshrl.u32 %v252, 16
        %v365 = vshll.u32 %v252, 16
        %v367 = vrot.slane %v365, 1
        %v368 = vor.u32 %v363, %v367
        %v370 = vshll.u32 %v276, 16
        %v372 = vrot.slane %v370, 1
        %v373 = vsel %vm277, %v368, %v372
        %374 = vrot.lane.b32.xlu0 %v289, 4
        %v375 = vpop.permute.xlu0 %374
        %376 = vrot.lane.b32.xlu0 %v301, 4
        %v377 = vpop.permute.xlu0 %376
        %378 = vrot.lane.b32.xlu0 %v313, 4
        %v379 = vpop.permute.xlu0 %378
        %380 = vrot.lane.b32.xlu0 %v325, 4
        %v381 = vpop.permute.xlu0 %380
        %382 = vrot.lane.b32.xlu0 %v337, 4
        %v383 = vpop.permute.xlu0 %382
        %384 = vrot.lane.b32.xlu0 %v349, 4
        %v385 = vpop.permute.xlu0 %384
        %386 = vrot.lane.b32.xlu0 %v361, 4
        %v387 = vpop.permute.xlu0 %386
        %388 = vrot.lane.b32.xlu0 %v373, 4
        %v389 = vpop.permute.xlu0 %388
        %vm390 = vcmask 1046528
        %v391 = vrot.slane %v245, 1
        %v392 = vrot.slane %v269, 1
        %v393 = vsel %vm390, %v391, %v392
        %v394 = vrot.slane %v246, 1
        %v395 = vrot.slane %v270, 1
        %v396 = vsel %vm390, %v394, %v395
        %v397 = vrot.slane %v247, 1
        %v398 = vrot.slane %v271, 1
        %v399 = vsel %vm390, %v397, %v398
        %v400 = vrot.slane %v248, 1
        %v401 = vrot.slane %v272, 1
        %v402 = vsel %vm390, %v400, %v401
        %v403 = vrot.slane %v249, 1
        %v404 = vrot.slane %v273, 1
        %v405 = vsel %vm390, %v403, %v404
        %v406 = vrot.slane %v250, 1
        %v407 = vrot.slane %v274, 1
        %v408 = vsel %vm390, %v406, %v407
        %v409 = vrot.slane %v251, 1
        %v410 = vrot.slane %v275, 1
        %v411 = vsel %vm390, %v409, %v410
        %v412 = vrot.slane %v252, 1
        %v413 = vrot.slane %v276, 1
        %v414 = vsel %vm390, %v412, %v413
        %415 = vrot.lane.b32.xlu0 %v393, 8
        %v416 = vpop.permute.xlu0 %415
        %417 = vrot.lane.b32.xlu0 %v396, 8
        %v418 = vpop.permute.xlu0 %417
        %419 = vrot.lane.b32.xlu0 %v399, 8
        %v420 = vpop.permute.xlu0 %419
        %421 = vrot.lane.b32.xlu0 %v402, 8
        %v422 = vpop.permute.xlu0 %421
        %423 = vrot.lane.b32.xlu0 %v405, 8
        %v424 = vpop.permute.xlu0 %423
        %425 = vrot.lane.b32.xlu0 %v408, 8
        %v426 = vpop.permute.xlu0 %425
        %427 = vrot.lane.b32.xlu0 %v411, 8
        %v428 = vpop.permute.xlu0 %427
        %429 = vrot.lane.b32.xlu0 %v414, 8
        %v430 = vpop.permute.xlu0 %429
        %vm431 = vcmask 31744
        %v433 = vsel %vm431, %v245, %v375
        %v435 = vsel %vm431, %v246, %v377
        %v437 = vsel %vm431, %v247, %v379
        %v439 = vsel %vm431, %v248, %v381
        %v441 = vsel %vm431, %v249, %v383
        %v443 = vsel %vm431, %v250, %v385
        %v445 = vsel %vm431, %v251, %v387
        %v447 = vsel %vm431, %v252, %v389
        %vm448 = vcmask 64512
        %v450 = vsel %vm448, %v433, %v416
        %v452 = vsel %vm448, %v435, %v418
        %v454 = vsel %vm448, %v437, %v420
        %v456 = vsel %vm448, %v439, %v422
        %v458 = vsel %vm448, %v441, %v424
        %v460 = vsel %vm448, %v443, %v426
        %v462 = vsel %vm448, %v445, %v428
        %v464 = vsel %vm448, %v447, %v430
        %v465 = vld [vmem:[%s1] sm:$0xf]
        %v466 = vld [vmem:[%s1 + $0x4] sm:$0x3]
        %v469 = vunpack.c.l.b16 %v465
        %v470 = vunpack.c.l.b16 %v466
        %v471 = vpack.c.b16 %v470, %v469
        %vm472 = vcmask 97280
        %v473 = vsel %vm472, %v450, 0
        %v475 = vsel %vm472, %v452, 0
        %v477 = vsel %vm472, %v454, 0
        %v479 = vsel %vm472, %v456, 0
        %v481 = vsel %vm472, %v458, 0
        %v483 = vsel %vm472, %v460, 0
        %v485 = vsel %vm472, %v462, 0
        %v487 = vsel %vm472, %v464, 0
        %vm489 = vcmask 1045504
        %v491 = vsel %vm489, %v471, 0
        %493 = vmatprep.subr.bf16.mxu0 0
        %494 = vmatpush1.bf16.msra.mxu0 0
        %495 = vmatprep.subr.bf16.mxu0 0
        %496 = vmatpush1.bf16.msra.mxu0 0
        %497 = vmatprep.subr.bf16.mxu0 0
        %498 = vmatpush1.bf16.msra.mxu0 0
        %499 = vmatprep.subr.bf16.mxu0 0
        %500 = vmatpush1.bf16.msra.mxu0 0
        %501 = vmatprep.subr.bf16.mxu0 0
        %502 = vmatpush1.bf16.msra.mxu0 0
        %503 = vmatprep.subr.bf16.mxu0 0
        %504 = vmatpush1.bf16.msra.mxu0 0
        %505 = vmatprep.subr.bf16.mxu0 0
        %506 = vmatpush1.bf16.msra.mxu0 0
        %507 = vmatprep.subr.bf16.mxu0 0
        %508 = vmatpush1.bf16.msra.mxu0 %v491
        %509 = vmatprep.subr.bf16.mxu0 0
        %510 = vmatpush2.bf16.msra.mxu0 0
        %511 = vmatprep.subr.bf16.mxu0 0
        %512 = vmatpush2.bf16.msra.mxu0 0
        %513 = vmatprep.subr.bf16.mxu0 0
        %514 = vmatpush2.bf16.msra.mxu0 0
        %515 = vmatprep.subr.bf16.mxu0 0
        %516 = vmatpush2.bf16.msra.mxu0 0
        %517 = vmatprep.subr.bf16.mxu0 0
        %518 = vmatpush2.bf16.msra.mxu0 0
        %519 = vmatprep.subr.bf16.mxu0 0
        %520 = vmatpush2.bf16.msra.mxu0 0
        %521 = vmatprep.subr.bf16.mxu0 0
        %522 = vmatpush2.bf16.msra.mxu0 0
        %523 = vmatprep.subr.bf16.mxu0 0
        %524 = vmatpush2.bf16.msra.mxu0 0
        %525 = vmatprep.mubr.bf16.mxu0 0
        %526 = vmatmul.mubr.bf16.gmra.mxu0 %v473
        %v527 = vpop.f32.mrf.mxu0
        %v528 = vadd.f32 0.0, %v527
        %v529 = vpop.f32.mrf.mxu0
        %v530 = vpop.f32.mrf.mxu0
        %v531 = vadd.f32 0.0, %v530
        %v532 = vpop.f32.mrf.mxu0
        %533 = vmatprep.mubr.bf16.mxu0 0
        %534 = vmatmul.mubr.bf16.gmra.mxu0 %v475
        %v535 = vpop.f32.mrf.mxu0
        %v536 = vadd.f32 0.0, %v535
        %v537 = vpop.f32.mrf.mxu0
        %v538 = vpop.f32.mrf.mxu0
        %v539 = vadd.f32 0.0, %v538
        %v540 = vpop.f32.mrf.mxu0
        %541 = vmatprep.mubr.bf16.mxu0 0
        %542 = vmatmul.mubr.bf16.gmra.mxu0 %v477
        %v543 = vpop.f32.mrf.mxu0
        %v544 = vadd.f32 0.0, %v543
        %v545 = vpop.f32.mrf.mxu0
        %v546 = vpop.f32.mrf.mxu0
        %v547 = vadd.f32 0.0, %v546
        %v548 = vpop.f32.mrf.mxu0
        %549 = vmatprep.mubr.bf16.mxu0 0
        %550 = vmatmul.mubr.bf16.gmra.mxu0 %v479
        %v551 = vpop.f32.mrf.mxu0
        %v552 = vadd.f32 0.0, %v551
        %v553 = vpop.f32.mrf.mxu0
        %v554 = vpop.f32.mrf.mxu0
        %v555 = vadd.f32 0.0, %v554
        %v556 = vpop.f32.mrf.mxu0
        %557 = vmatprep.mubr.bf16.mxu0 0
        %558 = vmatmul.mubr.bf16.gmra.mxu0 %v481
        %v559 = vpop.f32.mrf.mxu0
        %v560 = vadd.f32 0.0, %v559
        %v561 = vpop.f32.mrf.mxu0
        %v562 = vpop.f32.mrf.mxu0
        %v563 = vadd.f32 0.0, %v562
        %v564 = vpop.f32.mrf.mxu0
        %565 = vmatprep.mubr.bf16.mxu0 0
        %566 = vmatmul.mubr.bf16.gmra.mxu0 %v483
        %v567 = vpop.f32.mrf.mxu0
        %v568 = vadd.f32 0.0, %v567
        %v569 = vpop.f32.mrf.mxu0
        %v570 = vpop.f32.mrf.mxu0
        %v571 = vadd.f32 0.0, %v570
        %v572 = vpop.f32.mrf.mxu0
        %573 = vmatprep.mubr.bf16.mxu0 0
        %574 = vmatmul.mubr.bf16.gmra.mxu0 %v485
        %v575 = vpop.f32.mrf.mxu0
        %v576 = vadd.f32 0.0, %v575
        %v577 = vpop.f32.mrf.mxu0
        %v578 = vpop.f32.mrf.mxu0
        %v579 = vadd.f32 0.0, %v578
        %v580 = vpop.f32.mrf.mxu0
        %581 = vmatprep.mubr.bf16.mxu0 0
        %582 = vmatmul.mubr.bf16.gmra.mxu0 %v487
        %v583 = vpop.f32.mrf.mxu0
        %v584 = vadd.f32 0.0, %v583
        %v585 = vpop.f32.mrf.mxu0
        %v586 = vpop.f32.mrf.mxu0
        %v587 = vadd.f32 0.0, %v586
        %v588 = vpop.f32.mrf.mxu0
        %589 = vdwg.mxu0
        %590 = vst [vmem:[#allocation2] sm:$0xff] %v528
        %591 = vst [vmem:[#allocation2 + $0x8] sm:$0xff] %v531
        %592 = vst [vmem:[#allocation2 + $0x10] sm:$0xff] %v536
        %593 = vst [vmem:[#allocation2 + $0x18] sm:$0xff] %v539
        %594 = vst [vmem:[#allocation2 + $0x20] sm:$0xff] %v544
        %595 = vst [vmem:[#allocation2 + $0x28] sm:$0xff] %v547
        %596 = vst [vmem:[#allocation2 + $0x30] sm:$0xff] %v552
        %597 = vst [vmem:[#allocation2 + $0x38] sm:$0xff] %v555
        %598 = vst [vmem:[#allocation2 + $0x40] sm:$0xff] %v560
        %599 = vst [vmem:[#allocation2 + $0x48] sm:$0xff] %v563
        %600 = vst [vmem:[#allocation2 + $0x50] sm:$0xff] %v568
        %601 = vst [vmem:[#allocation2 + $0x58] sm:$0xff] %v571
        %602 = vst [vmem:[#allocation2 + $0x60] sm:$0xff] %v576
        %603 = vst [vmem:[#allocation2 + $0x68] sm:$0xff] %v579
        %604 = vst [vmem:[#allocation2 + $0x70] sm:$0xff] %v584
        %605 = vst [vmem:[#allocation2 + $0x78] sm:$0xff] %v587
        %s606 = sadd.s32 %s185, 1
        %s607 = smul.u32 %s606, 3
        %s608 = smul.addr %s607, 4
        %s609 = scalar_lea.vmem %s182, %s608
        %v610 = vld [vmem:[%s609] sm:$0xf]
        %v611 = vld [vmem:[%s609 + $0x4] sm:$0xf]
        %v612 = vld [vmem:[%s609 + $0x8] sm:$0x1]
        %v613 = vld [vmem:[%s609 + $0xc] sm:$0xf]
        %v614 = vld [vmem:[%s609 + $0x10] sm:$0xf]
        %v615 = vld [vmem:[%s609 + $0x14] sm:$0x1]
        %v616 = vld [vmem:[%s609 + $0x18] sm:$0xf]
        %v617 = vld [vmem:[%s609 + $0x1c] sm:$0xf]
        %v618 = vld [vmem:[%s609 + $0x20] sm:$0x1]
        %v619 = vld [vmem:[%s609 + $0x24] sm:$0xf]
        %v620 = vld [vmem:[%s609 + $0x28] sm:$0xf]
        %v621 = vld [vmem:[%s609 + $0x2c] sm:$0x1]
        %v622 = vld [vmem:[%s609 + $0x30] sm:$0xf]
        %v623 = vld [vmem:[%s609 + $0x34] sm:$0xf]
        %v624 = vld [vmem:[%s609 + $0x38] sm:$0x1]
        %v625 = vld [vmem:[%s609 + $0x3c] sm:$0xf]
        %v626 = vld [vmem:[%s609 + $0x40] sm:$0xf]
        %v627 = vld [vmem:[%s609 + $0x44] sm:$0x1]
        %v628 = vld [vmem:[%s609 + $0x48] sm:$0xf]
        %v629 = vld [vmem:[%s609 + $0x4c] sm:$0xf]
        %v630 = vld [vmem:[%s609 + $0x50] sm:$0x1]
        %v631 = vld [vmem:[%s609 + $0x54] sm:$0xf]
        %v632 = vld [vmem:[%s609 + $0x58] sm:$0xf]
        %v633 = vld [vmem:[%s609 + $0x5c] sm:$0x1]
        %v650 = vunpack.c.l.b16 %v610
        %v651 = vunpack.c.l.b16 %v611
        %v652 = vunpack.c.l.b16 %v613
        %v653 = vunpack.c.l.b16 %v614
        %v654 = vunpack.c.l.b16 %v616
        %v655 = vunpack.c.l.b16 %v617
        %v656 = vunpack.c.l.b16 %v619
        %v657 = vunpack.c.l.b16 %v620
        %v658 = vunpack.c.l.b16 %v622
        %v659 = vunpack.c.l.b16 %v623
        %v660 = vunpack.c.l.b16 %v625
        %v661 = vunpack.c.l.b16 %v626
        %v662 = vunpack.c.l.b16 %v628
        %v663 = vunpack.c.l.b16 %v629
        %v664 = vunpack.c.l.b16 %v631
        %v665 = vunpack.c.l.b16 %v632
        %v666 = vpack.c.b16 %v651, %v650
        %v667 = vpack.c.b16 %v653, %v652
        %v668 = vpack.c.b16 %v655, %v654
        %v669 = vpack.c.b16 %v657, %v656
        %v670 = vpack.c.b16 %v659, %v658
        %v671 = vpack.c.b16 %v661, %v660
        %v672 = vpack.c.b16 %v663, %v662
        %v673 = vpack.c.b16 %v665, %v664
        %v682 = vunpack.c.l.b16 %v612
        %v683 = vunpack.c.l.b16 %v615
        %v684 = vunpack.c.l.b16 %v618
        %v685 = vunpack.c.l.b16 %v621
        %v686 = vunpack.c.l.b16 %v624
        %v687 = vunpack.c.l.b16 %v627
        %v688 = vunpack.c.l.b16 %v630
        %v689 = vunpack.c.l.b16 %v633
        %v690 = vpack.c.b16 %v682, %v682
        %v691 = vpack.c.b16 %v683, %v683
        %v692 = vpack.c.b16 %v684, %v684
        %v693 = vpack.c.b16 %v685, %v685
        %v694 = vpack.c.b16 %v686, %v686
        %v695 = vpack.c.b16 %v687, %v687
        %v696 = vpack.c.b16 %v688, %v688
        %v697 = vpack.c.b16 %v689, %v689
        %v699 = vshrl.u32 %v666, 16
        %v701 = vshll.u32 %v666, 16
        %v703 = vrot.slane %v701, 1
        %v704 = vor.u32 %v699, %v703
        %v706 = vshll.u32 %v690, 16
        %v708 = vrot.slane %v706, 1
        %v709 = vsel %vm277, %v704, %v708
        %v711 = vshrl.u32 %v667, 16
        %v713 = vshll.u32 %v667, 16
        %v715 = vrot.slane %v713, 1
        %v716 = vor.u32 %v711, %v715
        %v718 = vshll.u32 %v691, 16
        %v720 = vrot.slane %v718, 1
        %v721 = vsel %vm277, %v716, %v720
        %v723 = vshrl.u32 %v668, 16
        %v725 = vshll.u32 %v668, 16
        %v727 = vrot.slane %v725, 1
        %v728 = vor.u32 %v723, %v727
        %v730 = vshll.u32 %v692, 16
        %v732 = vrot.slane %v730, 1
        %v733 = vsel %vm277, %v728, %v732
        %v735 = vshrl.u32 %v669, 16
        %v737 = vshll.u32 %v669, 16
        %v739 = vrot.slane %v737, 1
        %v740 = vor.u32 %v735, %v739
        %v742 = vshll.u32 %v693, 16
        %v744 = vrot.slane %v742, 1
        %v745 = vsel %vm277, %v740, %v744
        %v747 = vshrl.u32 %v670, 16
        %v749 = vshll.u32 %v670, 16
        %v751 = vrot.slane %v749, 1
        %v752 = vor.u32 %v747, %v751
        %v754 = vshll.u32 %v694, 16
        %v756 = vrot.slane %v754, 1
        %v757 = vsel %vm277, %v752, %v756
        %v759 = vshrl.u32 %v671, 16
        %v761 = vshll.u32 %v671, 16
        %v763 = vrot.slane %v761, 1
        %v764 = vor.u32 %v759, %v763
        %v766 = vshll.u32 %v695, 16
        %v768 = vrot.slane %v766, 1
        %v769 = vsel %vm277, %v764, %v768
        %v771 = vshrl.u32 %v672, 16
        %v773 = vshll.u32 %v672, 16
        %v775 = vrot.slane %v773, 1
        %v776 = vor.u32 %v771, %v775
        %v778 = vshll.u32 %v696, 16
        %v780 = vrot.slane %v778, 1
        %v781 = vsel %vm277, %v776, %v780
        %v783 = vshrl.u32 %v673, 16
        %v785 = vshll.u32 %v673, 16
        %v787 = vrot.slane %v785, 1
        %v788 = vor.u32 %v783, %v787
        %v790 = vshll.u32 %v697, 16
        %v792 = vrot.slane %v790, 1
        %v793 = vsel %vm277, %v788, %v792
        %794 = vrot.lane.b32.xlu0 %v709, 4
        %v795 = vpop.permute.xlu0 %794
        %796 = vrot.lane.b32.xlu0 %v721, 4
        %v797 = vpop.permute.xlu0 %796
        %798 = vrot.lane.b32.xlu0 %v733, 4
        %v799 = vpop.permute.xlu0 %798
        %800 = vrot.lane.b32.xlu0 %v745, 4
        %v801 = vpop.permute.xlu0 %800
        %802 = vrot.lane.b32.xlu0 %v757, 4
        %v803 = vpop.permute.xlu0 %802
        %804 = vrot.lane.b32.xlu0 %v769, 4
        %v805 = vpop.permute.xlu0 %804
        %806 = vrot.lane.b32.xlu0 %v781, 4
        %v807 = vpop.permute.xlu0 %806
        %808 = vrot.lane.b32.xlu0 %v793, 4
        %v809 = vpop.permute.xlu0 %808
        %v810 = vrot.slane %v666, 1
        %v811 = vrot.slane %v690, 1
        %v812 = vsel %vm390, %v810, %v811
        %v813 = vrot.slane %v667, 1
        %v814 = vrot.slane %v691, 1
        %v815 = vsel %vm390, %v813, %v814
        %v816 = vrot.slane %v668, 1
        %v817 = vrot.slane %v692, 1
        %v818 = vsel %vm390, %v816, %v817
        %v819 = vrot.slane %v669, 1
        %v820 = vrot.slane %v693, 1
        %v821 = vsel %vm390, %v819, %v820
        %v822 = vrot.slane %v670, 1
        %v823 = vrot.slane %v694, 1
        %v824 = vsel %vm390, %v822, %v823
        %v825 = vrot.slane %v671, 1
        %v826 = vrot.slane %v695, 1
        %v827 = vsel %vm390, %v825, %v826
        %v828 = vrot.slane %v672, 1
        %v829 = vrot.slane %v696, 1
        %v830 = vsel %vm390, %v828, %v829
        %v831 = vrot.slane %v673, 1
        %v832 = vrot.slane %v697, 1
        %v833 = vsel %vm390, %v831, %v832
        %834 = vrot.lane.b32.xlu0 %v812, 8
        %v835 = vpop.permute.xlu0 %834
        %836 = vrot.lane.b32.xlu0 %v815, 8
        %v837 = vpop.permute.xlu0 %836
        %838 = vrot.lane.b32.xlu0 %v818, 8
        %v839 = vpop.permute.xlu0 %838
        %840 = vrot.lane.b32.xlu0 %v821, 8
        %v841 = vpop.permute.xlu0 %840
        %842 = vrot.lane.b32.xlu0 %v824, 8
        %v843 = vpop.permute.xlu0 %842
        %844 = vrot.lane.b32.xlu0 %v827, 8
        %v845 = vpop.permute.xlu0 %844
        %846 = vrot.lane.b32.xlu0 %v830, 8
        %v847 = vpop.permute.xlu0 %846
        %848 = vrot.lane.b32.xlu0 %v833, 8
        %v849 = vpop.permute.xlu0 %848
        %v851 = vsel %vm431, %v666, %v795
        %v853 = vsel %vm431, %v667, %v797
        %v855 = vsel %vm431, %v668, %v799
        %v857 = vsel %vm431, %v669, %v801
        %v859 = vsel %vm431, %v670, %v803
        %v861 = vsel %vm431, %v671, %v805
        %v863 = vsel %vm431, %v672, %v807
        %v865 = vsel %vm431, %v673, %v809
        %v867 = vsel %vm448, %v851, %v835
        %v869 = vsel %vm448, %v853, %v837
        %v871 = vsel %vm448, %v855, %v839
        %v873 = vsel %vm448, %v857, %v841
        %v875 = vsel %vm448, %v859, %v843
        %v877 = vsel %vm448, %v861, %v845
        %v879 = vsel %vm448, %v863, %v847
        %v881 = vsel %vm448, %v865, %v849
        %s882 = scalar_lea.vmem %s1, 8
        %v883 = vld [vmem:[%s882] sm:$0xf]
        %v884 = vld [vmem:[%s882 + $0x4] sm:$0x3]
        %v887 = vunpack.c.l.b16 %v883
        %v888 = vunpack.c.l.b16 %v884
        %v889 = vpack.c.b16 %v888, %v887
        %v890 = vsel %vm472, %v867, 0
        %v892 = vsel %vm472, %v869, 0
        %v894 = vsel %vm472, %v871, 0
        %v896 = vsel %vm472, %v873, 0
        %v898 = vsel %vm472, %v875, 0
        %v900 = vsel %vm472, %v877, 0
        %v902 = vsel %vm472, %v879, 0
        %v904 = vsel %vm472, %v881, 0
        %v907 = vsel %vm489, %v889, 0
        %909 = vmatprep.subr.bf16.mxu0 0
        %910 = vmatpush1.bf16.msra.mxu0 0
        %911 = vmatprep.subr.bf16.mxu0 0
        %912 = vmatpush1.bf16.msra.mxu0 0
        %913 = vmatprep.subr.bf16.mxu0 0
        %914 = vmatpush1.bf16.msra.mxu0 0
        %915 = vmatprep.subr.bf16.mxu0 0
        %916 = vmatpush1.bf16.msra.mxu0 0
        %917 = vmatprep.subr.bf16.mxu0 0
        %918 = vmatpush1.bf16.msra.mxu0 0
        %919 = vmatprep.subr.bf16.mxu0 0
        %920 = vmatpush1.bf16.msra.mxu0 0
        %921 = vmatprep.subr.bf16.mxu0 0
        %922 = vmatpush1.bf16.msra.mxu0 0
        %923 = vmatprep.subr.bf16.mxu0 0
        %924 = vmatpush1.bf16.msra.mxu0 %v907
        %925 = vmatprep.subr.bf16.mxu0 0
        %926 = vmatpush2.bf16.msra.mxu0 0
        %927 = vmatprep.subr.bf16.mxu0 0
        %928 = vmatpush2.bf16.msra.mxu0 0
        %929 = vmatprep.subr.bf16.mxu0 0
        %930 = vmatpush2.bf16.msra.mxu0 0
        %931 = vmatprep.subr.bf16.mxu0 0
        %932 = vmatpush2.bf16.msra.mxu0 0
        %933 = vmatprep.subr.bf16.mxu0 0
        %934 = vmatpush2.bf16.msra.mxu0 0
        %935 = vmatprep.subr.bf16.mxu0 0
        %936 = vmatpush2.bf16.msra.mxu0 0
        %937 = vmatprep.subr.bf16.mxu0 0
        %938 = vmatpush2.bf16.msra.mxu0 0
        %939 = vmatprep.subr.bf16.mxu0 0
        %940 = vmatpush2.bf16.msra.mxu0 0
        %941 = vmatprep.mubr.bf16.mxu0 0
        %942 = vmatmul.mubr.bf16.gmra.mxu0 %v890
        %v943 = vpop.f32.mrf.mxu0
        %v944 = vadd.f32 0.0, %v943
        %v945 = vpop.f32.mrf.mxu0
        %v946 = vpop.f32.mrf.mxu0
        %v947 = vadd.f32 0.0, %v946
        %v948 = vpop.f32.mrf.mxu0
        %949 = vmatprep.mubr.bf16.mxu0 0
        %950 = vmatmul.mubr.bf16.gmra.mxu0 %v892
        %v951 = vpop.f32.mrf.mxu0
        %v952 = vadd.f32 0.0, %v951
        %v953 = vpop.f32.mrf.mxu0
        %v954 = vpop.f32.mrf.mxu0
        %v955 = vadd.f32 0.0, %v954
        %v956 = vpop.f32.mrf.mxu0
        %957 = vmatprep.mubr.bf16.mxu0 0
        %958 = vmatmul.mubr.bf16.gmra.mxu0 %v894
        %v959 = vpop.f32.mrf.mxu0
        %v960 = vadd.f32 0.0, %v959
        %v961 = vpop.f32.mrf.mxu0
        %v962 = vpop.f32.mrf.mxu0
        %v963 = vadd.f32 0.0, %v962
        %v964 = vpop.f32.mrf.mxu0
        %965 = vmatprep.mubr.bf16.mxu0 0
        %966 = vmatmul.mubr.bf16.gmra.mxu0 %v896
        %v967 = vpop.f32.mrf.mxu0
        %v968 = vadd.f32 0.0, %v967
        %v969 = vpop.f32.mrf.mxu0
        %v970 = vpop.f32.mrf.mxu0
        %v971 = vadd.f32 0.0, %v970
        %v972 = vpop.f32.mrf.mxu0
        %973 = vmatprep.mubr.bf16.mxu0 0
        %974 = vmatmul.mubr.bf16.gmra.mxu0 %v898
        %v975 = vpop.f32.mrf.mxu0
        %v976 = vadd.f32 0.0, %v975
        %v977 = vpop.f32.mrf.mxu0
        %v978 = vpop.f32.mrf.mxu0
        %v979 = vadd.f32 0.0, %v978
        %v980 = vpop.f32.mrf.mxu0
        %981 = vmatprep.mubr.bf16.mxu0 0
        %982 = vmatmul.mubr.bf16.gmra.mxu0 %v900
        %v983 = vpop.f32.mrf.mxu0
        %v984 = vadd.f32 0.0, %v983
        %v985 = vpop.f32.mrf.mxu0
        %v986 = vpop.f32.mrf.mxu0
        %v987 = vadd.f32 0.0, %v986
        %v988 = vpop.f32.mrf.mxu0
        %989 = vmatprep.mubr.bf16.mxu0 0
        %990 = vmatmul.mubr.bf16.gmra.mxu0 %v902
        %v991 = vpop.f32.mrf.mxu0
        %v992 = vadd.f32 0.0, %v991
        %v993 = vpop.f32.mrf.mxu0
        %v994 = vpop.f32.mrf.mxu0
        %v995 = vadd.f32 0.0, %v994
        %v996 = vpop.f32.mrf.mxu0
        %997 = vmatprep.mubr.bf16.mxu0 0
        %998 = vmatmul.mubr.bf16.gmra.mxu0 %v904
        %v999 = vpop.f32.mrf.mxu0
        %v1000 = vadd.f32 0.0, %v999
        %v1001 = vpop.f32.mrf.mxu0
        %v1002 = vpop.f32.mrf.mxu0
        %v1003 = vadd.f32 0.0, %v1002
        %v1004 = vpop.f32.mrf.mxu0
        %1005 = vdwg.mxu0
        %v1006 = vld [vmem:[#allocation2] sm:$0xff]
        %v1007 = vld [vmem:[#allocation2 + $0x8] sm:$0xff]
        %v1008 = vld [vmem:[#allocation2 + $0x10] sm:$0xff]
        %v1009 = vld [vmem:[#allocation2 + $0x18] sm:$0xff]
        %v1010 = vld [vmem:[#allocation2 + $0x20] sm:$0xff]
        %v1011 = vld [vmem:[#allocation2 + $0x28] sm:$0xff]
        %v1012 = vld [vmem:[#allocation2 + $0x30] sm:$0xff]
        %v1013 = vld [vmem:[#allocation2 + $0x38] sm:$0xff]
        %v1014 = vld [vmem:[#allocation2 + $0x40] sm:$0xff]
        %v1015 = vld [vmem:[#allocation2 + $0x48] sm:$0xff]
        %v1016 = vld [vmem:[#allocation2 + $0x50] sm:$0xff]
        %v1017 = vld [vmem:[#allocation2 + $0x58] sm:$0xff]
        %v1018 = vld [vmem:[#allocation2 + $0x60] sm:$0xff]
        %v1019 = vld [vmem:[#allocation2 + $0x68] sm:$0xff]
        %v1020 = vld [vmem:[#allocation2 + $0x70] sm:$0xff]
        %v1021 = vld [vmem:[#allocation2 + $0x78] sm:$0xff]
        %v1022 = vadd.f32 %v1006, %v944
        %v1023 = vadd.f32 %v1007, %v947
        %v1024 = vadd.f32 %v1008, %v952
        %v1025 = vadd.f32 %v1009, %v955
        %v1026 = vadd.f32 %v1010, %v960
        %v1027 = vadd.f32 %v1011, %v963
        %v1028 = vadd.f32 %v1012, %v968
        %v1029 = vadd.f32 %v1013, %v971
        %v1030 = vadd.f32 %v1014, %v976
        %v1031 = vadd.f32 %v1015, %v979
        %v1032 = vadd.f32 %v1016, %v984
        %v1033 = vadd.f32 %v1017, %v987
        %v1034 = vadd.f32 %v1018, %v992
        %v1035 = vadd.f32 %v1019, %v995
        %v1036 = vadd.f32 %v1020, %v1000
        %v1037 = vadd.f32 %v1021, %v1003
        %1038 = vst [vmem:[#allocation2] sm:$0xff] %v1022
        %1039 = vst [vmem:[#allocation2 + $0x8] sm:$0xff] %v1023
        %1040 = vst [vmem:[#allocation2 + $0x10] sm:$0xff] %v1024
        %1041 = vst [vmem:[#allocation2 + $0x18] sm:$0xff] %v1025
        %1042 = vst [vmem:[#allocation2 + $0x20] sm:$0xff] %v1026
        %1043 = vst [vmem:[#allocation2 + $0x28] sm:$0xff] %v1027
        %1044 = vst [vmem:[#allocation2 + $0x30] sm:$0xff] %v1028
        %1045 = vst [vmem:[#allocation2 + $0x38] sm:$0xff] %v1029
        %1046 = vst [vmem:[#allocation2 + $0x40] sm:$0xff] %v1030
        %1047 = vst [vmem:[#allocation2 + $0x48] sm:$0xff] %v1031
        %1048 = vst [vmem:[#allocation2 + $0x50] sm:$0xff] %v1032
        %1049 = vst [vmem:[#allocation2 + $0x58] sm:$0xff] %v1033
        %1050 = vst [vmem:[#allocation2 + $0x60] sm:$0xff] %v1034
        %1051 = vst [vmem:[#allocation2 + $0x68] sm:$0xff] %v1035
        %1052 = vst [vmem:[#allocation2 + $0x70] sm:$0xff] %v1036
        %1053 = vst [vmem:[#allocation2 + $0x78] sm:$0xff] %v1037
        %s1054 = sadd.s32 %s185, 2
        %s1055 = smul.u32 %s1054, 3
        %s1056 = smul.addr %s1055, 4
        %s1057 = scalar_lea.vmem %s182, %s1056
        %v1058 = vld [vmem:[%s1057] sm:$0xf]
        %v1059 = vld [vmem:[%s1057 + $0x4] sm:$0xf]
        %v1060 = vld [vmem:[%s1057 + $0x8] sm:$0x1]
        %v1061 = vld [vmem:[%s1057 + $0xc] sm:$0xf]
        %v1062 = vld [vmem:[%s1057 + $0x10] sm:$0xf]
        %v1063 = vld [vmem:[%s1057 + $0x14] sm:$0x1]
        %v1064 = vld [vmem:[%s1057 + $0x18] sm:$0xf]
        %v1065 = vld [vmem:[%s1057 + $0x1c] sm:$0xf]
        %v1066 = vld [vmem:[%s1057 + $0x20] sm:$0x1]
        %v1067 = vld [vmem:[%s1057 + $0x24] sm:$0xf]
        %v1068 = vld [vmem:[%s1057 + $0x28] sm:$0xf]
        %v1069 = vld [vmem:[%s1057 + $0x2c] sm:$0x1]
        %v1070 = vld [vmem:[%s1057 + $0x30] sm:$0xf]
        %v1071 = vld [vmem:[%s1057 + $0x34] sm:$0xf]
        %v1072 = vld [vmem:[%s1057 + $0x38] sm:$0x1]
        %v1073 = vld [vmem:[%s1057 + $0x3c] sm:$0xf]
        %v1074 = vld [vmem:[%s1057 + $0x40] sm:$0xf]
        %v1075 = vld [vmem:[%s1057 + $0x44] sm:$0x1]
        %v1076 = vld [vmem:[%s1057 + $0x48] sm:$0xf]
        %v1077 = vld [vmem:[%s1057 + $0x4c] sm:$0xf]
        %v1078 = vld [vmem:[%s1057 + $0x50] sm:$0x1]
        %v1079 = vld [vmem:[%s1057 + $0x54] sm:$0xf]
        %v1080 = vld [vmem:[%s1057 + $0x58] sm:$0xf]
        %v1081 = vld [vmem:[%s1057 + $0x5c] sm:$0x1]
        %v1098 = vunpack.c.l.b16 %v1058
        %v1099 = vunpack.c.l.b16 %v1059
        %v1100 = vunpack.c.l.b16 %v1061
        %v1101 = vunpack.c.l.b16 %v1062
        %v1102 = vunpack.c.l.b16 %v1064
        %v1103 = vunpack.c.l.b16 %v1065
        %v1104 = vunpack.c.l.b16 %v1067
        %v1105 = vunpack.c.l.b16 %v1068
        %v1106 = vunpack.c.l.b16 %v1070
        %v1107 = vunpack.c.l.b16 %v1071
        %v1108 = vunpack.c.l.b16 %v1073
        %v1109 = vunpack.c.l.b16 %v1074
        %v1110 = vunpack.c.l.b16 %v1076
        %v1111 = vunpack.c.l.b16 %v1077
        %v1112 = vunpack.c.l.b16 %v1079
        %v1113 = vunpack.c.l.b16 %v1080
        %v1114 = vpack.c.b16 %v1099, %v1098
        %v1115 = vpack.c.b16 %v1101, %v1100
        %v1116 = vpack.c.b16 %v1103, %v1102
        %v1117 = vpack.c.b16 %v1105, %v1104
        %v1118 = vpack.c.b16 %v1107, %v1106
        %v1119 = vpack.c.b16 %v1109, %v1108
        %v1120 = vpack.c.b16 %v1111, %v1110
        %v1121 = vpack.c.b16 %v1113, %v1112
        %v1130 = vunpack.c.l.b16 %v1060
        %v1131 = vunpack.c.l.b16 %v1063
        %v1132 = vunpack.c.l.b16 %v1066
        %v1133 = vunpack.c.l.b16 %v1069
        %v1134 = vunpack.c.l.b16 %v1072
        %v1135 = vunpack.c.l.b16 %v1075
        %v1136 = vunpack.c.l.b16 %v1078
        %v1137 = vunpack.c.l.b16 %v1081
        %v1138 = vpack.c.b16 %v1130, %v1130
        %v1139 = vpack.c.b16 %v1131, %v1131
        %v1140 = vpack.c.b16 %v1132, %v1132
        %v1141 = vpack.c.b16 %v1133, %v1133
        %v1142 = vpack.c.b16 %v1134, %v1134
        %v1143 = vpack.c.b16 %v1135, %v1135
        %v1144 = vpack.c.b16 %v1136, %v1136
        %v1145 = vpack.c.b16 %v1137, %v1137
        %v1147 = vshrl.u32 %v1114, 16
        %v1149 = vshll.u32 %v1114, 16
        %v1151 = vrot.slane %v1149, 1
        %v1152 = vor.u32 %v1147, %v1151
        %v1154 = vshll.u32 %v1138, 16
        %v1156 = vrot.slane %v1154, 1
        %v1157 = vsel %vm277, %v1152, %v1156
        %v1159 = vshrl.u32 %v1115, 16
        %v1161 = vshll.u32 %v1115, 16
        %v1163 = vrot.slane %v1161, 1
        %v1164 = vor.u32 %v1159, %v1163
        %v1166 = vshll.u32 %v1139, 16
        %v1168 = vrot.slane %v1166, 1
        %v1169 = vsel %vm277, %v1164, %v1168
        %v1171 = vshrl.u32 %v1116, 16
        %v1173 = vshll.u32 %v1116, 16
        %v1175 = vrot.slane %v1173, 1
        %v1176 = vor.u32 %v1171, %v1175
        %v1178 = vshll.u32 %v1140, 16
        %v1180 = vrot.slane %v1178, 1
        %v1181 = vsel %vm277, %v1176, %v1180
        %v1183 = vshrl.u32 %v1117, 16
        %v1185 = vshll.u32 %v1117, 16
        %v1187 = vrot.slane %v1185, 1
        %v1188 = vor.u32 %v1183, %v1187
        %v1190 = vshll.u32 %v1141, 16
        %v1192 = vrot.slane %v1190, 1
        %v1193 = vsel %vm277, %v1188, %v1192
        %v1195 = vshrl.u32 %v1118, 16
        %v1197 = vshll.u32 %v1118, 16
        %v1199 = vrot.slane %v1197, 1
        %v1200 = vor.u32 %v1195, %v1199
        %v1202 = vshll.u32 %v1142, 16
        %v1204 = vrot.slane %v1202, 1
        %v1205 = vsel %vm277, %v1200, %v1204
        %v1207 = vshrl.u32 %v1119, 16
        %v1209 = vshll.u32 %v1119, 16
        %v1211 = vrot.slane %v1209, 1
        %v1212 = vor.u32 %v1207, %v1211
        %v1214 = vshll.u32 %v1143, 16
        %v1216 = vrot.slane %v1214, 1
        %v1217 = vsel %vm277, %v1212, %v1216
        %v1219 = vshrl.u32 %v1120, 16
        %v1221 = vshll.u32 %v1120, 16
        %v1223 = vrot.slane %v1221, 1
        %v1224 = vor.u32 %v1219, %v1223
        %v1226 = vshll.u32 %v1144, 16
        %v1228 = vrot.slane %v1226, 1
        %v1229 = vsel %vm277, %v1224, %v1228
        %v1231 = vshrl.u32 %v1121, 16
        %v1233 = vshll.u32 %v1121, 16
        %v1235 = vrot.slane %v1233, 1
        %v1236 = vor.u32 %v1231, %v1235
        %v1238 = vshll.u32 %v1145, 16
        %v1240 = vrot.slane %v1238, 1
        %v1241 = vsel %vm277, %v1236, %v1240
        %1242 = vrot.lane.b32.xlu0 %v1157, 4
        %v1243 = vpop.permute.xlu0 %1242
        %1244 = vrot.lane.b32.xlu0 %v1169, 4
        %v1245 = vpop.permute.xlu0 %1244
        %1246 = vrot.lane.b32.xlu0 %v1181, 4
        %v1247 = vpop.permute.xlu0 %1246
        %1248 = vrot.lane.b32.xlu0 %v1193, 4
        %v1249 = vpop.permute.xlu0 %1248
        %1250 = vrot.lane.b32.xlu0 %v1205, 4
        %v1251 = vpop.permute.xlu0 %1250
        %1252 = vrot.lane.b32.xlu0 %v1217, 4
        %v1253 = vpop.permute.xlu0 %1252
        %1254 = vrot.lane.b32.xlu0 %v1229, 4
        %v1255 = vpop.permute.xlu0 %1254
        %1256 = vrot.lane.b32.xlu0 %v1241, 4
        %v1257 = vpop.permute.xlu0 %1256
        %v1258 = vrot.slane %v1114, 1
        %v1259 = vrot.slane %v1138, 1
        %v1260 = vsel %vm390, %v1258, %v1259
        %v1261 = vrot.slane %v1115, 1
        %v1262 = vrot.slane %v1139, 1
        %v1263 = vsel %vm390, %v1261, %v1262
        %v1264 = vrot.slane %v1116, 1
        %v1265 = vrot.slane %v1140, 1
        %v1266 = vsel %vm390, %v1264, %v1265
        %v1267 = vrot.slane %v1117, 1
        %v1268 = vrot.slane %v1141, 1
        %v1269 = vsel %vm390, %v1267, %v1268
        %v1270 = vrot.slane %v1118, 1
        %v1271 = vrot.slane %v1142, 1
        %v1272 = vsel %vm390, %v1270, %v1271
        %v1273 = vrot.slane %v1119, 1
        %v1274 = vrot.slane %v1143, 1
        %v1275 = vsel %vm390, %v1273, %v1274
        %v1276 = vrot.slane %v1120, 1
        %v1277 = vrot.slane %v1144, 1
        %v1278 = vsel %vm390, %v1276, %v1277
        %v1279 = vrot.slane %v1121, 1
        %v1280 = vrot.slane %v1145, 1
        %v1281 = vsel %vm390, %v1279, %v1280
        %1282 = vrot.lane.b32.xlu0 %v1260, 8
        %v1283 = vpop.permute.xlu0 %1282
        %1284 = vrot.lane.b32.xlu0 %v1263, 8
        %v1285 = vpop.permute.xlu0 %1284
        %1286 = vrot.lane.b32.xlu0 %v1266, 8
        %v1287 = vpop.permute.xlu0 %1286
        %1288 = vrot.lane.b32.xlu0 %v1269, 8
        %v1289 = vpop.permute.xlu0 %1288
        %1290 = vrot.lane.b32.xlu0 %v1272, 8
        %v1291 = vpop.permute.xlu0 %1290
        %1292 = vrot.lane.b32.xlu0 %v1275, 8
        %v1293 = vpop.permute.xlu0 %1292
        %1294 = vrot.lane.b32.xlu0 %v1278, 8
        %v1295 = vpop.permute.xlu0 %1294
        %1296 = vrot.lane.b32.xlu0 %v1281, 8
        %v1297 = vpop.permute.xlu0 %1296
        %v1299 = vsel %vm431, %v1114, %v1243
        %v1301 = vsel %vm431, %v1115, %v1245
        %v1303 = vsel %vm431, %v1116, %v1247
        %v1305 = vsel %vm431, %v1117, %v1249
        %v1307 = vsel %vm431, %v1118, %v1251
        %v1309 = vsel %vm431, %v1119, %v1253
        %v1311 = vsel %vm431, %v1120, %v1255
        %v1313 = vsel %vm431, %v1121, %v1257
        %v1315 = vsel %vm448, %v1299, %v1283
        %v1317 = vsel %vm448, %v1301, %v1285
        %v1319 = vsel %vm448, %v1303, %v1287
        %v1321 = vsel %vm448, %v1305, %v1289
        %v1323 = vsel %vm448, %v1307, %v1291
        %v1325 = vsel %vm448, %v1309, %v1293
        %v1327 = vsel %vm448, %v1311, %v1295
        %v1329 = vsel %vm448, %v1313, %v1297
        %s1330 = scalar_lea.vmem %s1, 16
        %v1331 = vld [vmem:[%s1330] sm:$0xf]
        %v1332 = vld [vmem:[%s1330 + $0x4] sm:$0x3]
        %v1335 = vunpack.c.l.b16 %v1331
        %v1336 = vunpack.c.l.b16 %v1332
        %v1337 = vpack.c.b16 %v1336, %v1335
        %v1338 = vsel %vm472, %v1315, 0
        %v1340 = vsel %vm472, %v1317, 0
        %v1342 = vsel %vm472, %v1319, 0
        %v1344 = vsel %vm472, %v1321, 0
        %v1346 = vsel %vm472, %v1323, 0
        %v1348 = vsel %vm472, %v1325, 0
        %v1350 = vsel %vm472, %v1327, 0
        %v1352 = vsel %vm472, %v1329, 0
        %v1355 = vsel %vm489, %v1337, 0
        %1357 = vmatprep.subr.bf16.mxu0 0
        %1358 = vmatpush1.bf16.msra.mxu0 0
        %1359 = vmatprep.subr.bf16.mxu0 0
        %1360 = vmatpush1.bf16.msra.mxu0 0
        %1361 = vmatprep.subr.bf16.mxu0 0
        %1362 = vmatpush1.bf16.msra.mxu0 0
        %1363 = vmatprep.subr.bf16.mxu0 0
        %1364 = vmatpush1.bf16.msra.mxu0 0
        %1365 = vmatprep.subr.bf16.mxu0 0
        %1366 = vmatpush1.bf16.msra.mxu0 0
        %1367 = vmatprep.subr.bf16.mxu0 0
        %1368 = vmatpush1.bf16.msra.mxu0 0
        %1369 = vmatprep.subr.bf16.mxu0 0
        %1370 = vmatpush1.bf16.msra.mxu0 0
        %1371 = vmatprep.subr.bf16.mxu0 0
        %1372 = vmatpush1.bf16.msra.mxu0 %v1355
        %1373 = vmatprep.subr.bf16.mxu0 0
        %1374 = vmatpush2.bf16.msra.mxu0 0
        %1375 = vmatprep.subr.bf16.mxu0 0
        %1376 = vmatpush2.bf16.msra.mxu0 0
        %1377 = vmatprep.subr.bf16.mxu0 0
        %1378 = vmatpush2.bf16.msra.mxu0 0
        %1379 = vmatprep.subr.bf16.mxu0 0
        %1380 = vmatpush2.bf16.msra.mxu0 0
        %1381 = vmatprep.subr.bf16.mxu0 0
        %1382 = vmatpush2.bf16.msra.mxu0 0
        %1383 = vmatprep.subr.bf16.mxu0 0
        %1384 = vmatpush2.bf16.msra.mxu0 0
        %1385 = vmatprep.subr.bf16.mxu0 0
        %1386 = vmatpush2.bf16.msra.mxu0 0
        %1387 = vmatprep.subr.bf16.mxu0 0
        %1388 = vmatpush2.bf16.msra.mxu0 0
        %1389 = vmatprep.mubr.bf16.mxu0 0
        %1390 = vmatmul.mubr.bf16.gmra.mxu0 %v1338
        %v1391 = vpop.f32.mrf.mxu0
        %v1392 = vadd.f32 0.0, %v1391
        %v1393 = vpop.f32.mrf.mxu0
        %v1394 = vpop.f32.mrf.mxu0
        %v1395 = vadd.f32 0.0, %v1394
        %v1396 = vpop.f32.mrf.mxu0
        %1397 = vmatprep.mubr.bf16.mxu0 0
        %1398 = vmatmul.mubr.bf16.gmra.mxu0 %v1340
        %v1399 = vpop.f32.mrf.mxu0
        %v1400 = vadd.f32 0.0, %v1399
        %v1401 = vpop.f32.mrf.mxu0
        %v1402 = vpop.f32.mrf.mxu0
        %v1403 = vadd.f32 0.0, %v1402
        %v1404 = vpop.f32.mrf.mxu0
        %1405 = vmatprep.mubr.bf16.mxu0 0
        %1406 = vmatmul.mubr.bf16.gmra.mxu0 %v1342
        %v1407 = vpop.f32.mrf.mxu0
        %v1408 = vadd.f32 0.0, %v1407
        %v1409 = vpop.f32.mrf.mxu0
        %v1410 = vpop.f32.mrf.mxu0
        %v1411 = vadd.f32 0.0, %v1410
        %v1412 = vpop.f32.mrf.mxu0
        %1413 = vmatprep.mubr.bf16.mxu0 0
        %1414 = vmatmul.mubr.bf16.gmra.mxu0 %v1344
        %v1415 = vpop.f32.mrf.mxu0
        %v1416 = vadd.f32 0.0, %v1415
        %v1417 = vpop.f32.mrf.mxu0
        %v1418 = vpop.f32.mrf.mxu0
        %v1419 = vadd.f32 0.0, %v1418
        %v1420 = vpop.f32.mrf.mxu0
        %1421 = vmatprep.mubr.bf16.mxu0 0
        %1422 = vmatmul.mubr.bf16.gmra.mxu0 %v1346
        %v1423 = vpop.f32.mrf.mxu0
        %v1424 = vadd.f32 0.0, %v1423
        %v1425 = vpop.f32.mrf.mxu0
        %v1426 = vpop.f32.mrf.mxu0
        %v1427 = vadd.f32 0.0, %v1426
        %v1428 = vpop.f32.mrf.mxu0
        %1429 = vmatprep.mubr.bf16.mxu0 0
        %1430 = vmatmul.mubr.bf16.gmra.mxu0 %v1348
        %v1431 = vpop.f32.mrf.mxu0
        %v1432 = vadd.f32 0.0, %v1431
        %v1433 = vpop.f32.mrf.mxu0
        %v1434 = vpop.f32.mrf.mxu0
        %v1435 = vadd.f32 0.0, %v1434
        %v1436 = vpop.f32.mrf.mxu0
        %1437 = vmatprep.mubr.bf16.mxu0 0
        %1438 = vmatmul.mubr.bf16.gmra.mxu0 %v1350
        %v1439 = vpop.f32.mrf.mxu0
        %v1440 = vadd.f32 0.0, %v1439
        %v1441 = vpop.f32.mrf.mxu0
        %v1442 = vpop.f32.mrf.mxu0
        %v1443 = vadd.f32 0.0, %v1442
        %v1444 = vpop.f32.mrf.mxu0
        %1445 = vmatprep.mubr.bf16.mxu0 0
        %1446 = vmatmul.mubr.bf16.gmra.mxu0 %v1352
        %v1447 = vpop.f32.mrf.mxu0
        %v1448 = vadd.f32 0.0, %v1447
        %v1449 = vpop.f32.mrf.mxu0
        %v1450 = vpop.f32.mrf.mxu0
        %v1451 = vadd.f32 0.0, %v1450
        %v1452 = vpop.f32.mrf.mxu0
        %1453 = vdwg.mxu0
        %v1454 = vld [vmem:[#allocation2] sm:$0xff]
        %v1455 = vld [vmem:[#allocation2 + $0x8] sm:$0xff]
        %v1456 = vld [vmem:[#allocation2 + $0x10] sm:$0xff]
        %v1457 = vld [vmem:[#allocation2 + $0x18] sm:$0xff]
        %v1458 = vld [vmem:[#allocation2 + $0x20] sm:$0xff]
        %v1459 = vld [vmem:[#allocation2 + $0x28] sm:$0xff]
        %v1460 = vld [vmem:[#allocation2 + $0x30] sm:$0xff]
        %v1461 = vld [vmem:[#allocation2 + $0x38] sm:$0xff]
        %v1462 = vld [vmem:[#allocation2 + $0x40] sm:$0xff]
        %v1463 = vld [vmem:[#allocation2 + $0x48] sm:$0xff]
        %v1464 = vld [vmem:[#allocation2 + $0x50] sm:$0xff]
        %v1465 = vld [vmem:[#allocation2 + $0x58] sm:$0xff]
        %v1466 = vld [vmem:[#allocation2 + $0x60] sm:$0xff]
        %v1467 = vld [vmem:[#allocation2 + $0x68] sm:$0xff]
        %v1468 = vld [vmem:[#allocation2 + $0x70] sm:$0xff]
        %v1469 = vld [vmem:[#allocation2 + $0x78] sm:$0xff]
        %v1470 = vadd.f32 %v1454, %v1392
        %v1471 = vadd.f32 %v1455, %v1395
        %v1472 = vadd.f32 %v1456, %v1400
        %v1473 = vadd.f32 %v1457, %v1403
        %v1474 = vadd.f32 %v1458, %v1408
        %v1475 = vadd.f32 %v1459, %v1411
        %v1476 = vadd.f32 %v1460, %v1416
        %v1477 = vadd.f32 %v1461, %v1419
        %v1478 = vadd.f32 %v1462, %v1424
        %v1479 = vadd.f32 %v1463, %v1427
        %v1480 = vadd.f32 %v1464, %v1432
        %v1481 = vadd.f32 %v1465, %v1435
        %v1482 = vadd.f32 %v1466, %v1440
        %v1483 = vadd.f32 %v1467, %v1443
        %v1484 = vadd.f32 %v1468, %v1448
        %v1485 = vadd.f32 %v1469, %v1451
        %1486 = vst [vmem:[#allocation2] sm:$0xff] %v1470
        %1487 = vst [vmem:[#allocation2 + $0x8] sm:$0xff] %v1471
        %1488 = vst [vmem:[#allocation2 + $0x10] sm:$0xff] %v1472
        %1489 = vst [vmem:[#allocation2 + $0x18] sm:$0xff] %v1473
        %1490 = vst [vmem:[#allocation2 + $0x20] sm:$0xff] %v1474
        %1491 = vst [vmem:[#allocation2 + $0x28] sm:$0xff] %v1475
        %1492 = vst [vmem:[#allocation2 + $0x30] sm:$0xff] %v1476
        %1493 = vst [vmem:[#allocation2 + $0x38] sm:$0xff] %v1477
        %1494 = vst [vmem:[#allocation2 + $0x40] sm:$0xff] %v1478
        %1495 = vst [vmem:[#allocation2 + $0x48] sm:$0xff] %v1479
        %1496 = vst [vmem:[#allocation2 + $0x50] sm:$0xff] %v1480
        %1497 = vst [vmem:[#allocation2 + $0x58] sm:$0xff] %v1481
        %1498 = vst [vmem:[#allocation2 + $0x60] sm:$0xff] %v1482
        %1499 = vst [vmem:[#allocation2 + $0x68] sm:$0xff] %v1483
        %1500 = vst [vmem:[#allocation2 + $0x70] sm:$0xff] %v1484
        %1501 = vst [vmem:[#allocation2 + $0x78] sm:$0xff] %v1485
        %v1502 = vld [vmem:[#allocation2] sm:$0xff]
        %v1503 = vld [vmem:[#allocation2 + $0x8] sm:$0xff]
        %v1504 = vld [vmem:[#allocation2 + $0x10] sm:$0xff]
        %v1505 = vld [vmem:[#allocation2 + $0x18] sm:$0xff]
        %v1506 = vld [vmem:[#allocation2 + $0x20] sm:$0xff]
        %v1507 = vld [vmem:[#allocation2 + $0x28] sm:$0xff]
        %v1508 = vld [vmem:[#allocation2 + $0x30] sm:$0xff]
        %v1509 = vld [vmem:[#allocation2 + $0x38] sm:$0xff]
        %v1510 = vld [vmem:[#allocation2 + $0x40] sm:$0xff]
        %v1511 = vld [vmem:[#allocation2 + $0x48] sm:$0xff]
        %v1512 = vld [vmem:[#allocation2 + $0x50] sm:$0xff]
        %v1513 = vld [vmem:[#allocation2 + $0x58] sm:$0xff]
        %v1514 = vld [vmem:[#allocation2 + $0x60] sm:$0xff]
        %v1515 = vld [vmem:[#allocation2 + $0x68] sm:$0xff]
        %v1516 = vld [vmem:[#allocation2 + $0x70] sm:$0xff]
        %v1517 = vld [vmem:[#allocation2 + $0x78] sm:$0xff]
        %v1518 = vld [vmem:[%s2] sm:$0x1]
        %v1520 = vlaneseq
        %v1521 = vshrl.u32 %v1520, 7
        %v1522 = vsub.s32 0, %v1521
        %v1523 = vrot.slane %v1518, %v1522
        %v1525 = vadd.f32 %v1502, %v1523
        %v1526 = vadd.f32 %v1503, %v1523
        %v1527 = vadd.f32 %v1504, %v1523
        %v1528 = vadd.f32 %v1505, %v1523
        %v1529 = vadd.f32 %v1506, %v1523
        %v1530 = vadd.f32 %v1507, %v1523
        %v1531 = vadd.f32 %v1508, %v1523
        %v1532 = vadd.f32 %v1509, %v1523
        %v1533 = vadd.f32 %v1510, %v1523
        %v1534 = vadd.f32 %v1511, %v1523
        %v1535 = vadd.f32 %v1512, %v1523
        %v1536 = vadd.f32 %v1513, %v1523
        %v1537 = vadd.f32 %v1514, %v1523
        %v1538 = vadd.f32 %v1515, %v1523
        %v1539 = vadd.f32 %v1516, %v1523
        %v1540 = vadd.f32 %v1517, %v1523
        %1541 = vst [vmem:[%s177] sm:$0xff] %v1525
        %1542 = vst [vmem:[%s177 + $0x8] sm:$0xff] %v1526
        %1543 = vst [vmem:[%s177 + $0x10] sm:$0xff] %v1527
        %1544 = vst [vmem:[%s177 + $0x18] sm:$0xff] %v1528
        %1545 = vst [vmem:[%s177 + $0x20] sm:$0xff] %v1529
        %1546 = vst [vmem:[%s177 + $0x28] sm:$0xff] %v1530
        %1547 = vst [vmem:[%s177 + $0x30] sm:$0xff] %v1531
        %1548 = vst [vmem:[%s177 + $0x38] sm:$0xff] %v1532
        %1549 = vst [vmem:[%s177 + $0x40] sm:$0xff] %v1533
        %1550 = vst [vmem:[%s177 + $0x48] sm:$0xff] %v1534
        %1551 = vst [vmem:[%s177 + $0x50] sm:$0xff] %v1535
        %1552 = vst [vmem:[%s177 + $0x58] sm:$0xff] %v1536
        %1553 = vst [vmem:[%s177 + $0x60] sm:$0xff] %v1537
        %1554 = vst [vmem:[%s177 + $0x68] sm:$0xff] %v1538
        %1555 = vst [vmem:[%s177 + $0x70] sm:$0xff] %v1539
        %1556 = vst [vmem:[%s177 + $0x78] sm:$0xff] %v1540
        %s1557 = sand.u32 %s107, 1
        %s1558 = scalar_lea.sflag [#allocation4], %s1557
        %s1559 = sand.u32 %s107, 1
        %s1560 = smul.addr %s1559, 128
        %s1561 = scalar_lea.vmem [#allocation3], %s1560
        // Predicated region
        $region33: #{tpu_custom_call.1} parent=31 // pred_check
          %p1562 = pneg %p117
        $region34: #{tpu_custom_call.1} parent=31 // pred_check_branch
          %1564 = sbr.rel (%p1562) target = $region36
        $region35: #{tpu_custom_call.1} parent=31 // pred_region
          %s1565 = smul.u32 16, %s22
          %s1567 = ssub.s32 2048, 2048
          %1568 = vsyncadd %s1558, %s1567
          %s1569 = smul.addr %s21, 32
          %s1570 = sadd.s32 %s1565, %s1569
          %s1571 = smul.addr %s1570, 128
          %s1572 = scalar_lea.hbm %s3, %s1571
          %s1573 = sshll.u32 %s1561, 4
          %s1574 = int_to_ptr.vmem [resolvable:$true] %s1573
          %1579 = dma.vmem_to_hbm [thread:$0]  %s1574, 2048, %s1572, %s1558, 128, 128, 8
        $region36: #{tpu_custom_call.1} parent=31 // pred_fallthru
          _
      $region32: #{tpu_custom_call.1} parent=5 // pred_fallthru
        _
      %p1580 = scmp.le.s32.totalorder 2, %s12
      // Predicated region
      $region37: #{tpu_custom_call.1} parent=5 // pred_check
        %p1581 = pneg %p1580
      $region38: #{tpu_custom_call.1} parent=5 // pred_check_branch
        %1583 = sbr.rel (%p1581) target = $region40
      $region39: #{tpu_custom_call.1} parent=5 // pred_region
        %s1584 = ssub.s32 %s12, 2
        // Predicated region
        $region41: #{tpu_custom_call.1} parent=39 // pred_check
          %p1585 = pneg %p123
        $region42: #{tpu_custom_call.1} parent=39 // pred_check_branch
          %1587 = sbr.rel (%p1585) target = $region44
        $region43: #{tpu_custom_call.1} parent=39 // pred_region
          %s1588 = sand.u32 %s108, 1
          %s1589 = scalar_lea.sflag [#allocation4], %s1588
          %s1590 = sand.u32 %s108, 1
          %s1591 = smul.addr %s1590, 128
          %s1592 = scalar_lea.vmem [#allocation3], %s1591
          %1593 = dma.done %s1589, 2048
        $region44: #{tpu_custom_call.1} parent=39 // pred_fallthru
          _
      $region40: #{tpu_custom_call.1} parent=5 // pred_fallthru
        _
    $region6: #{tpu_custom_call.1} parent=1 // loop_footer
      %s16 = sadd.s32 1, %s12
    $region7: #{tpu_custom_call.1} parent=1 // loop_footer_branch
      %11 = sbr.rel target = $region3
    $region8: #{tpu_custom_call.1} parent=1 // loop_exit
      _
    %1594 = vsyncpa [#allocation4], 1
    %s1595 = scalar_lea.sflag [#allocation4], 1
    %1596 = vsyncpa %s1595, 1

</llo_original>
